<compile_context>
chip_gen: v6e
topology: v6e:2x2x1
jax: 0.10.0
libtpu: 0.0.40
codegen_flags: <defaults>
</compile_context>

<pallas_src>
import functools

import jax
import jax.numpy as jnp
import numpy as np
from jax.experimental import pallas as pl
from jax.experimental.pallas import tpu as pltpu


# ----------------------------------------------------------------------------
# Fused Pallas kernel (node pipeline + edge encoder)
# ----------------------------------------------------------------------------
def _fused_node_edge_kernel(nb, T, heads, hd, Eh,
                            xcol_ref,      # (nb*T, 1) f32  raw node values (column)
                            xres_ref,      # (1, nb, T) f32 node values + bff2 (residual)
                            e_ref,         # (E, 1)  f32    raw edge values
                            wm_ref,        # (Rw, 6H) bf16  packed matmul weights
                            vr_ref,        # (8, Hp) f32    packed row vectors / biases
                            node_new_ref,  # (1, nb, T) f32
                            enc_node_ref,  # (1, nb, H) f32
                            enc_edge_ref): # (1, E, Eh) f32
    f32 = jnp.float32
    bf16 = jnp.bfloat16
    H = heads * hd
    R = nb * T

    wm = wm_ref[...]
    vr = vr_ref[...]

    w_enc = vr[0:1, :H]          # node_enc_for_att weight row
    b_enc = vr[1:2, :H]
    b_fc = vr[2:3, :H]
    b_ff1 = vr[3:4, :H]
    w_ff2 = vr[4:5, :H]          # feed_forward_att final (H -> 1) weight row
    b_node = vr[5:6, :H]
    w_edge = vr[6:7, :Eh]
    b_edge = vr[7:8, :Eh]

    w_qkv = wm[:H, 0:3 * H]      # block-diag per head; Wq pre-scaled by 1/sqrt(H)
    w_fc = wm[:H, 3 * H:4 * H]
    w_ff1 = wm[:H, 4 * H:5 * H]
    w_node = wm[:T, 5 * H:6 * H]  # (T, H), [in, out]

    # --- node_enc_for_att: Linear(1, H) + ReLU (outer-product broadcast, VPU) ---
    x_col = xcol_ref[...]                                     # (R, 1)
    enc = jnp.maximum(x_col * w_enc + b_enc, 0.0)             # (R, H) f32

    # --- fused Q/K/V: one bf16 MXU matmul against block-diagonal weights ---
    qkv = jnp.dot(enc.astype(bf16), w_qkv, preferred_element_type=f32)  # (R, 3H)
    q = qkv[:, 0:H].reshape(nb, T, H)
    k = qkv[:, H:2 * H].reshape(nb, T, H)
    v = qkv[:, 2 * H:3 * H].reshape(nb, T, H)

    # --- per-head attention, batched over the nb nodes of this block ---
    head_outs = []
    for h in range(heads):
        sl = slice(h * hd, (h + 1) * hd)
        qh = q[:, :, sl].astype(bf16)
        kh = k[:, :, sl].astype(bf16)
        vh = v[:, :, sl].astype(bf16)
        en = jax.lax.dot_general(qh, kh, (((2,), (2,)), ((0,), (0,))),
                                 preferred_element_type=f32)          # (nb, T, T)
        en = en - jnp.max(en, axis=-1, keepdims=True)
        p = jnp.exp(en)
        att = p * pl.reciprocal(jnp.sum(p, axis=-1, keepdims=True), approx=True)
        oh = jax.lax.dot_general(att.astype(bf16), vh, (((2,), (1,)), ((0,), (0,))),
                                 preferred_element_type=f32)          # (nb, T, hd)
        head_outs.append(oh.reshape(R, hd))
    att_cat = jnp.concatenate(head_outs, axis=-1)                     # (R, H)

    # --- fc_out: single (R, H) @ (H, H) matmul ---
    att_out = jnp.dot(att_cat.astype(bf16), w_fc, preferred_element_type=f32) + b_fc

    # --- feed_forward_att: Linear(H,H)+ReLU, then H->1 as VPU mul + lane reduce ---
    ff = jnp.maximum(
        jnp.dot(att_out.astype(bf16), w_ff1, preferred_element_type=f32) + b_ff1,
        0.0)                                                          # (R, H)
    ff2 = jnp.sum(ff.reshape(nb, T, H) * w_ff2.reshape(1, 1, H), axis=-1)  # (nb, T)

    # --- residual add (bff2 already folded into xres on the host) ---
    node_new = ff2 + xres_ref[0]                                      # (nb, T)
    node_new_ref[0] = node_new

    # --- node_enc: Linear(T, H) + ReLU ---
    enc_node = jnp.maximum(
        jnp.dot(node_new.astype(bf16), w_node, preferred_element_type=f32) + b_node,
        0.0)
    enc_node_ref[0] = enc_node                                        # (nb, H)

    # --- edge_enc: Linear(1, Eh) + ReLU (tiny broadcast; own block per step) ---
    enc_edge_ref[0] = jnp.maximum(e_ref[...] * w_edge + b_edge, 0.0)  # (E, Eh)


# ----------------------------------------------------------------------------
# Wrapper
# ----------------------------------------------------------------------------
@functools.partial(jax.jit, static_argnames=("heads",))
def attention_gn_step(node_attr, edge_attr, params, heads):
    """One encoder step of attention_gn.forward (up to the GN input graph).

    node_attr: (N, T) float32, edge_attr: (E, 1) float32.
    Returns (node_attr_updated (N,T), encoded_node (N,H), encoded_edge (E,Eh)).
    """
    N, T = node_attr.shape
    H = params["wfc"].shape[0]
    assert H % heads == 0
    hd = H // heads
    E = edge_attr.shape[0]
    Eh = params["wedge"].shape[1]
    Hp = max(H, Eh)
    Rw = max(H, T)
    f32 = jnp.float32
    bf16 = jnp.bfloat16

    # Grid over node blocks: >=2 "parallel" steps when possible so v7x's two
    # TensorCores both get work.  (For much larger N, g would grow so nb*T stays
    # a few hundred rows and the activation slab fits comfortably in VMEM.)
    g = 1
    if N % 2 == 0 and ((N // 2) * T) % 8 == 0:
        g = 2
    nb = N // g

    # ---- host-side weight packing ----
    scale = 1.0 / float(np.sqrt(H))
    eye = jnp.eye(heads, dtype=f32)
    w_qkv = jnp.concatenate([jnp.kron(eye, params["wq"]) * scale,   # fold 1/sqrt(H)
                             jnp.kron(eye, params["wk"]),
                             jnp.kron(eye, params["wv"])], axis=1)  # (H, 3H)

    def pad2(a, rows, cols):
        return jnp.zeros((rows, cols), f32).at[:a.shape[0], :a.shape[1]].set(a)

    wmats = jnp.concatenate([
        pad2(w_qkv, Rw, 3 * H),
        pad2(params["wfc"], Rw, H),
        pad2(params["wff1"], Rw, H),
        pad2(params["wnode_pt"].T, Rw, H),       # node_enc weight as [in, out]
    ], axis=1).astype(bf16)                      # (Rw, 6H) bf16

    def row(a):
        a = a.reshape(-1).astype(f32)
        return jnp.zeros((Hp,), f32).at[:a.shape[0]].set(a)

    vrows = jnp.stack([
        row(params["w_enc_att"]), row(params["b_enc_att"]),
        row(params["bfc"]), row(params["bff1"]),
        row(params["wff2"]), row(params["bnode"]),
        row(params["wedge"]), row(params["bedge"]),
    ], axis=0)                                   # (8, Hp) f32

    x_col = node_attr.reshape(N * T, 1).astype(f32)
    # Fold the scalar bff2 into the residual input (node_new = ff2 + bff2 + x).
    x_res = (node_attr + params["bff2"][0, 0]).reshape(g, nb, T).astype(f32)
    e_col = edge_attr.astype(f32)

    kernel = functools.partial(_fused_node_edge_kernel, nb, T, heads, hd, Eh)
    node_new3, enc_node3, enc_edge3 = pl.pallas_call(
        kernel,
        out_shape=(jax.ShapeDtypeStruct((g, nb, T), f32),
                   jax.ShapeDtypeStruct((g, nb, H), f32),
                   jax.ShapeDtypeStruct((g, E, Eh), f32)),
        grid=(g,),
        in_specs=[
            pl.BlockSpec((nb * T, 1), lambda i: (i, 0)),        # x_col (per block)
            pl.BlockSpec((1, nb, T), lambda i: (i, 0, 0)),      # x_res (per block)
            pl.BlockSpec((E, 1), lambda i: (0, 0)),             # edge values
            pl.BlockSpec((Rw, 6 * H), lambda i: (0, 0)),        # packed weights
            pl.BlockSpec((8, Hp), lambda i: (0, 0)),            # packed rows/biases
        ],
        out_specs=(pl.BlockSpec((1, nb, T), lambda i: (i, 0, 0)),
                   pl.BlockSpec((1, nb, H), lambda i: (i, 0, 0)),
                   pl.BlockSpec((1, E, Eh), lambda i: (i, 0, 0))),
        compiler_params=pltpu.CompilerParams(dimension_semantics=("parallel",)),
    )(x_col, x_res, e_col, wmats, vrows)

    node_new = node_new3.reshape(N, T)
    enc_node = enc_node3.reshape(N, H)
    enc_edge = enc_edge3[0]
    return node_new, enc_node, enc_edge


# ----------------------------------------------------------------------------
# Pure-JAX reference (mirrors the PyTorch math, all float32)
# ----------------------------------------------------------------------------
def reference_step(x, e, p, heads):
    N, T = x.shape
    H = p["wfc"].shape[0]
    hd = H // heads
    enc = jax.nn.relu(x[:, :, None] * p["w_enc_att"][0][None, None, :] + p["b_enc_att"][0])
    e4 = enc.reshape(N, T, heads, hd)
    q = jnp.einsum("nthd,de->nthe", e4, p["wq"])
    k = jnp.einsum("nthd,de->nthe", e4, p["wk"])
    v = jnp.einsum("nthd,de->nthe", e4, p["wv"])
    energy = jnp.einsum("nqhd,nkhd->nqkh", q, k) / jnp.sqrt(jnp.float32(H))
    att = jax.nn.softmax(energy, axis=2)
    out = jnp.einsum("nqkh,nkhd->nqhd", att, v).reshape(N, T, H)
    out = out @ p["wfc"] + p["bfc"][0]
    ff = jax.nn.relu(out @ p["wff1"] + p["bff1"][0]) @ p["wff2"] + p["bff2"][0]
    node_new = ff[..., 0] + x
    enc_node = jax.nn.relu(node_new @ p["wnode_pt"].T + p["bnode"][:, 0])
    enc_edge = jax.nn.relu(e @ p["wedge"] + p["bedge"][0])
    return node_new, enc_node, enc_edge


# ----------------------------------------------------------------------------
# Main
# ----------------------------------------------------------------------------
if __name__ == "__main__":
    # Small, forward-consistent shapes:
    # in_channel=1, node_attr_size=T=16, node_hidden_size=H=32, heads=4,
    # edge_hidden_size=16, att_layer=1, 4 graph nodes, 10 edges.
    N_NODES, T, H, HEADS, EH, E = 4, 16, 32, 4, 16, 10
    HD = H // HEADS

    key = jax.random.PRNGKey(0)
    ks = jax.random.split(key, 18)

    def w(k, shape, scale=0.1):
        return (jax.random.normal(k, shape, jnp.float32) * scale).astype(jnp.float32)

    params = {
        "w_enc_att": w(ks[0], (1, H)),      # Linear(1, H).weight^T
        "b_enc_att": w(ks[1], (1, H)),
        "wq": w(ks[2], (HD, HD)),           # Linear(hd, hd).weight^T (no bias)
        "wk": w(ks[3], (HD, HD)),
        "wv": w(ks[4], (HD, HD)),
        "wfc": w(ks[5], (H, H)),            # fc_out.weight^T
        "bfc": w(ks[6], (1, H)),
        "wff1": w(ks[7], (H, H)),           # feed_forward_att[0].weight^T
        "bff1": w(ks[8], (1, H)),
        "wff2": w(ks[9], (H, 1)),           # feed_forward_att[2].weight^T (H -> 1)
        "bff2": w(ks[10], (1, 1)),
        "wnode_pt": w(ks[11], (H, T)),      # node_enc.weight (out, in) = (H, T)
        "bnode": w(ks[12], (H, 1)),
        "wedge": w(ks[13], (1, EH)),        # edge_enc.weight^T
        "bedge": w(ks[14], (1, EH)),
    }

    node_attr = jax.random.normal(ks[15], (N_NODES, T), jnp.float32)
    edge_attr = jax.random.normal(ks[16], (E, 1), jnp.float32)

    node_new, enc_node, enc_edge = attention_gn_step(node_attr, edge_attr, params, HEADS)
    jax.block_until_ready((node_new, enc_node, enc_edge))

    r_node_new, r_enc_node, r_enc_edge = reference_step(node_attr, edge_attr, params, HEADS)
    np.testing.assert_allclose(np.asarray(node_new), np.asarray(r_node_new), rtol=5e-2, atol=5e-2)
    np.testing.assert_allclose(np.asarray(enc_node), np.asarray(r_enc_node), rtol=5e-2, atol=5e-2)
    np.testing.assert_allclose(np.asarray(enc_edge), np.asarray(r_enc_edge), rtol=5e-2, atol=5e-2)

    print("KERNEL_OK")
</pallas_src>

<mosaic_0001>
module attributes {stable_mosaic.version = 11 : i64} {
  func.func @_fused_node_edge_kernel(%arg0: i32, %arg1: memref<32x1xf32, #tpu.memory_space<vmem>>, %arg2: memref<1x2x16xf32, #tpu.memory_space<vmem>>, %arg3: memref<10x1xf32, #tpu.memory_space<vmem>>, %arg4: memref<32x192xbf16, #tpu.memory_space<vmem>>, %arg5: memref<8x32xf32, #tpu.memory_space<vmem>>, %arg6: memref<1x2x16xf32, #tpu.memory_space<vmem>>, %arg7: memref<1x2x32xf32, #tpu.memory_space<vmem>>, %arg8: memref<1x10x16xf32, #tpu.memory_space<vmem>>) attributes {dimension_semantics = [#tpu.dimension_semantics<parallel>], iteration_bounds = array<i64: 2>, scalar_prefetch = 0 : i64, scratch_operands = 0 : i64, tpu.core_type = #tpu.core_type<tc>, window_params = [{transform_indices = @transform_0, window_bounds = array<i64: 32, 1>}, {transform_indices = @transform_1, window_bounds = array<i64: 1, 2, 16>}, {pipeline_mode = #tpu.pipeline_mode<synchronous>, transform_indices = @transform_2, window_bounds = array<i64: 10, 1>}, {pipeline_mode = #tpu.pipeline_mode<synchronous>, transform_indices = @transform_3, window_bounds = array<i64: 32, 192>}, {pipeline_mode = #tpu.pipeline_mode<synchronous>, transform_indices = @transform_4, window_bounds = array<i64: 8, 32>}, {transform_indices = @transform_5, window_bounds = array<i64: 1, 2, 16>}, {transform_indices = @transform_6, window_bounds = array<i64: 1, 2, 32>}, {transform_indices = @transform_7, window_bounds = array<i64: 1, 10, 16>}]} {
    %c0 = arith.constant 0 : index
    %c0_0 = arith.constant 0 : index
    %0 = vector.load %arg4[%c0, %c0_0] : memref<32x192xbf16, #tpu.memory_space<vmem>>, vector<32x192xbf16>
    %c0_1 = arith.constant 0 : index
    %c0_2 = arith.constant 0 : index
    %1 = vector.load %arg5[%c0_1, %c0_2] : memref<8x32xf32, #tpu.memory_space<vmem>>, vector<8x32xf32>
    %2 = vector.extract_strided_slice %1 {offsets = [0, 0], sizes = [1, 32], strides = [1, 1]} : vector<8x32xf32> to vector<1x32xf32>
    %3 = vector.extract_strided_slice %1 {offsets = [1, 0], sizes = [1, 32], strides = [1, 1]} : vector<8x32xf32> to vector<1x32xf32>
    %4 = vector.extract_strided_slice %1 {offsets = [2, 0], sizes = [1, 32], strides = [1, 1]} : vector<8x32xf32> to vector<1x32xf32>
    %5 = vector.extract_strided_slice %1 {offsets = [3, 0], sizes = [1, 32], strides = [1, 1]} : vector<8x32xf32> to vector<1x32xf32>
    %6 = vector.extract_strided_slice %1 {offsets = [4, 0], sizes = [1, 32], strides = [1, 1]} : vector<8x32xf32> to vector<1x32xf32>
    %7 = vector.extract_strided_slice %1 {offsets = [5, 0], sizes = [1, 32], strides = [1, 1]} : vector<8x32xf32> to vector<1x32xf32>
    %8 = vector.extract_strided_slice %1 {offsets = [6, 0], sizes = [1, 16], strides = [1, 1]} : vector<8x32xf32> to vector<1x16xf32>
    %9 = vector.extract_strided_slice %1 {offsets = [7, 0], sizes = [1, 16], strides = [1, 1]} : vector<8x32xf32> to vector<1x16xf32>
    %10 = vector.extract_strided_slice %0 {offsets = [0, 0], sizes = [32, 96], strides = [1, 1]} : vector<32x192xbf16> to vector<32x96xbf16>
    %11 = vector.extract_strided_slice %0 {offsets = [0, 96], sizes = [32, 32], strides = [1, 1]} : vector<32x192xbf16> to vector<32x32xbf16>
    %12 = vector.extract_strided_slice %0 {offsets = [0, 128], sizes = [32, 32], strides = [1, 1]} : vector<32x192xbf16> to vector<32x32xbf16>
    %13 = vector.extract_strided_slice %0 {offsets = [0, 160], sizes = [16, 32], strides = [1, 1]} : vector<32x192xbf16> to vector<16x32xbf16>
    %c0_3 = arith.constant 0 : index
    %c0_4 = arith.constant 0 : index
    %14 = vector.load %arg1[%c0_3, %c0_4] : memref<32x1xf32, #tpu.memory_space<vmem>>, vector<32x1xf32>
    %15 = vector.broadcast %14 : vector<32x1xf32> to vector<32x32xf32>
    %16 = vector.broadcast %2 : vector<1x32xf32> to vector<32x32xf32>
    %17 = arith.mulf %15, %16 : vector<32x32xf32>
    %18 = vector.broadcast %3 : vector<1x32xf32> to vector<32x32xf32>
    %19 = arith.addf %17, %18 : vector<32x32xf32>
    %cst = arith.constant 0.000000e+00 : f32
    %20 = vector.broadcast %cst : f32 to vector<32x32xf32>
    %21 = arith.maximumf %19, %20 : vector<32x32xf32>
    %22 = arith.truncf %21 : vector<32x32xf32> to vector<32x32xbf16>
    %cst_5 = arith.constant dense<0.000000e+00> : vector<32x96xf32>
    %23 = tpu.matmul %22, %10, %cst_5 {dimension_numbers = #tpu.dot_dimension_numbers<[1], [0], [0], [1], [0, 0, 1, 1], [], []>} : vector<32x32xbf16>, vector<32x96xbf16>, vector<32x96xf32> -> vector<32x96xf32>
    %24 = vector.extract_strided_slice %23 {offsets = [0, 0], sizes = [32, 32], strides = [1, 1]} : vector<32x96xf32> to vector<32x32xf32>
    %25 = vector.shape_cast %24 : vector<32x32xf32> to vector<2x16x32xf32>
    %26 = vector.extract_strided_slice %23 {offsets = [0, 32], sizes = [32, 32], strides = [1, 1]} : vector<32x96xf32> to vector<32x32xf32>
    %27 = vector.shape_cast %26 : vector<32x32xf32> to vector<2x16x32xf32>
    %28 = vector.extract_strided_slice %23 {offsets = [0, 64], sizes = [32, 32], strides = [1, 1]} : vector<32x96xf32> to vector<32x32xf32>
    %29 = vector.shape_cast %28 : vector<32x32xf32> to vector<2x16x32xf32>
    %30 = vector.extract_strided_slice %25 {offsets = [0, 0, 0], sizes = [2, 16, 8], strides = [1, 1, 1]} : vector<2x16x32xf32> to vector<2x16x8xf32>
    %31 = arith.truncf %30 : vector<2x16x8xf32> to vector<2x16x8xbf16>
    %32 = vector.extract_strided_slice %27 {offsets = [0, 0, 0], sizes = [2, 16, 8], strides = [1, 1, 1]} : vector<2x16x32xf32> to vector<2x16x8xf32>
    %33 = arith.truncf %32 : vector<2x16x8xf32> to vector<2x16x8xbf16>
    %34 = vector.extract_strided_slice %29 {offsets = [0, 0, 0], sizes = [2, 16, 8], strides = [1, 1, 1]} : vector<2x16x32xf32> to vector<2x16x8xf32>
    %35 = arith.truncf %34 : vector<2x16x8xf32> to vector<2x16x8xbf16>
    %cst_6 = arith.constant dense<0.000000e+00> : vector<2x16x16xf32>
    %36 = tpu.matmul %31, %33, %cst_6 {dimension_numbers = #tpu.dot_dimension_numbers<[2], [2], [1], [1], [0, 0, 0, 1, 1, 1], [0], [0]>} : vector<2x16x8xbf16>, vector<2x16x8xbf16>, vector<2x16x16xf32> -> vector<2x16x16xf32>
    %cst_7 = arith.constant dense<0xFF800000> : vector<2x16xf32>
    %37 = vector.multi_reduction <maximumf>, %36, %cst_7 [2] : vector<2x16x16xf32> to vector<2x16xf32>
    %38 = vector.shape_cast %37 : vector<2x16xf32> to vector<2x16x1xf32>
    %39 = vector.broadcast %38 : vector<2x16x1xf32> to vector<2x16x16xf32>
    %40 = arith.subf %36, %39 : vector<2x16x16xf32>
    %41 = math.exp %40 : vector<2x16x16xf32>
    %cst_8 = arith.constant dense<0.000000e+00> : vector<2x16xf32>
    %42 = vector.multi_reduction <add>, %41, %cst_8 [2] : vector<2x16x16xf32> to vector<2x16xf32>
    %43 = vector.shape_cast %42 : vector<2x16xf32> to vector<2x16x1xf32>
    %44 = tpu.reciprocal %43 {approx = true} : vector<2x16x1xf32> -> vector<2x16x1xf32>
    %45 = vector.broadcast %44 : vector<2x16x1xf32> to vector<2x16x16xf32>
    %46 = arith.mulf %41, %45 : vector<2x16x16xf32>
    %47 = arith.truncf %46 : vector<2x16x16xf32> to vector<2x16x16xbf16>
    %cst_9 = arith.constant dense<0.000000e+00> : vector<2x16x8xf32>
    %48 = tpu.matmul %47, %35, %cst_9 {dimension_numbers = #tpu.dot_dimension_numbers<[2], [1], [1], [2], [0, 0, 0, 1, 1, 2], [0], [0]>} : vector<2x16x16xbf16>, vector<2x16x8xbf16>, vector<2x16x8xf32> -> vector<2x16x8xf32>
    %49 = vector.shape_cast %48 : vector<2x16x8xf32> to vector<32x8xf32>
    %50 = vector.extract_strided_slice %25 {offsets = [0, 0, 8], sizes = [2, 16, 8], strides = [1, 1, 1]} : vector<2x16x32xf32> to vector<2x16x8xf32>
    %51 = arith.truncf %50 : vector<2x16x8xf32> to vector<2x16x8xbf16>
    %52 = vector.extract_strided_slice %27 {offsets = [0, 0, 8], sizes = [2, 16, 8], strides = [1, 1, 1]} : vector<2x16x32xf32> to vector<2x16x8xf32>
    %53 = arith.truncf %52 : vector<2x16x8xf32> to vector<2x16x8xbf16>
    %54 = vector.extract_strided_slice %29 {offsets = [0, 0, 8], sizes = [2, 16, 8], strides = [1, 1, 1]} : vector<2x16x32xf32> to vector<2x16x8xf32>
    %55 = arith.truncf %54 : vector<2x16x8xf32> to vector<2x16x8xbf16>
    %cst_10 = arith.constant dense<0.000000e+00> : vector<2x16x16xf32>
    %56 = tpu.matmul %51, %53, %cst_10 {dimension_numbers = #tpu.dot_dimension_numbers<[2], [2], [1], [1], [0, 0, 0, 1, 1, 1], [0], [0]>} : vector<2x16x8xbf16>, vector<2x16x8xbf16>, vector<2x16x16xf32> -> vector<2x16x16xf32>
    %cst_11 = arith.constant dense<0xFF800000> : vector<2x16xf32>
    %57 = vector.multi_reduction <maximumf>, %56, %cst_11 [2] : vector<2x16x16xf32> to vector<2x16xf32>
    %58 = vector.shape_cast %57 : vector<2x16xf32> to vector<2x16x1xf32>
    %59 = vector.broadcast %58 : vector<2x16x1xf32> to vector<2x16x16xf32>
    %60 = arith.subf %56, %59 : vector<2x16x16xf32>
    %61 = math.exp %60 : vector<2x16x16xf32>
    %cst_12 = arith.constant dense<0.000000e+00> : vector<2x16xf32>
    %62 = vector.multi_reduction <add>, %61, %cst_12 [2] : vector<2x16x16xf32> to vector<2x16xf32>
    %63 = vector.shape_cast %62 : vector<2x16xf32> to vector<2x16x1xf32>
    %64 = tpu.reciprocal %63 {approx = true} : vector<2x16x1xf32> -> vector<2x16x1xf32>
    %65 = vector.broadcast %64 : vector<2x16x1xf32> to vector<2x16x16xf32>
    %66 = arith.mulf %61, %65 : vector<2x16x16xf32>
    %67 = arith.truncf %66 : vector<2x16x16xf32> to vector<2x16x16xbf16>
    %cst_13 = arith.constant dense<0.000000e+00> : vector<2x16x8xf32>
    %68 = tpu.matmul %67, %55, %cst_13 {dimension_numbers = #tpu.dot_dimension_numbers<[2], [1], [1], [2], [0, 0, 0, 1, 1, 2], [0], [0]>} : vector<2x16x16xbf16>, vector<2x16x8xbf16>, vector<2x16x8xf32> -> vector<2x16x8xf32>
    %69 = vector.shape_cast %68 : vector<2x16x8xf32> to vector<32x8xf32>
    %70 = vector.extract_strided_slice %25 {offsets = [0, 0, 16], sizes = [2, 16, 8], strides = [1, 1, 1]} : vector<2x16x32xf32> to vector<2x16x8xf32>
    %71 = arith.truncf %70 : vector<2x16x8xf32> to vector<2x16x8xbf16>
    %72 = vector.extract_strided_slice %27 {offsets = [0, 0, 16], sizes = [2, 16, 8], strides = [1, 1, 1]} : vector<2x16x32xf32> to vector<2x16x8xf32>
    %73 = arith.truncf %72 : vector<2x16x8xf32> to vector<2x16x8xbf16>
    %74 = vector.extract_strided_slice %29 {offsets = [0, 0, 16], sizes = [2, 16, 8], strides = [1, 1, 1]} : vector<2x16x32xf32> to vector<2x16x8xf32>
    %75 = arith.truncf %74 : vector<2x16x8xf32> to vector<2x16x8xbf16>
    %cst_14 = arith.constant dense<0.000000e+00> : vector<2x16x16xf32>
    %76 = tpu.matmul %71, %73, %cst_14 {dimension_numbers = #tpu.dot_dimension_numbers<[2], [2], [1], [1], [0, 0, 0, 1, 1, 1], [0], [0]>} : vector<2x16x8xbf16>, vector<2x16x8xbf16>, vector<2x16x16xf32> -> vector<2x16x16xf32>
    %cst_15 = arith.constant dense<0xFF800000> : vector<2x16xf32>
    %77 = vector.multi_reduction <maximumf>, %76, %cst_15 [2] : vector<2x16x16xf32> to vector<2x16xf32>
    %78 = vector.shape_cast %77 : vector<2x16xf32> to vector<2x16x1xf32>
    %79 = vector.broadcast %78 : vector<2x16x1xf32> to vector<2x16x16xf32>
    %80 = arith.subf %76, %79 : vector<2x16x16xf32>
    %81 = math.exp %80 : vector<2x16x16xf32>
    %cst_16 = arith.constant dense<0.000000e+00> : vector<2x16xf32>
    %82 = vector.multi_reduction <add>, %81, %cst_16 [2] : vector<2x16x16xf32> to vector<2x16xf32>
    %83 = vector.shape_cast %82 : vector<2x16xf32> to vector<2x16x1xf32>
    %84 = tpu.reciprocal %83 {approx = true} : vector<2x16x1xf32> -> vector<2x16x1xf32>
    %85 = vector.broadcast %84 : vector<2x16x1xf32> to vector<2x16x16xf32>
    %86 = arith.mulf %81, %85 : vector<2x16x16xf32>
    %87 = arith.truncf %86 : vector<2x16x16xf32> to vector<2x16x16xbf16>
    %cst_17 = arith.constant dense<0.000000e+00> : vector<2x16x8xf32>
    %88 = tpu.matmul %87, %75, %cst_17 {dimension_numbers = #tpu.dot_dimension_numbers<[2], [1], [1], [2], [0, 0, 0, 1, 1, 2], [0], [0]>} : vector<2x16x16xbf16>, vector<2x16x8xbf16>, vector<2x16x8xf32> -> vector<2x16x8xf32>
    %89 = vector.shape_cast %88 : vector<2x16x8xf32> to vector<32x8xf32>
    %90 = vector.extract_strided_slice %25 {offsets = [0, 0, 24], sizes = [2, 16, 8], strides = [1, 1, 1]} : vector<2x16x32xf32> to vector<2x16x8xf32>
    %91 = arith.truncf %90 : vector<2x16x8xf32> to vector<2x16x8xbf16>
    %92 = vector.extract_strided_slice %27 {offsets = [0, 0, 24], sizes = [2, 16, 8], strides = [1, 1, 1]} : vector<2x16x32xf32> to vector<2x16x8xf32>
    %93 = arith.truncf %92 : vector<2x16x8xf32> to vector<2x16x8xbf16>
    %94 = vector.extract_strided_slice %29 {offsets = [0, 0, 24], sizes = [2, 16, 8], strides = [1, 1, 1]} : vector<2x16x32xf32> to vector<2x16x8xf32>
    %95 = arith.truncf %94 : vector<2x16x8xf32> to vector<2x16x8xbf16>
    %cst_18 = arith.constant dense<0.000000e+00> : vector<2x16x16xf32>
    %96 = tpu.matmul %91, %93, %cst_18 {dimension_numbers = #tpu.dot_dimension_numbers<[2], [2], [1], [1], [0, 0, 0, 1, 1, 1], [0], [0]>} : vector<2x16x8xbf16>, vector<2x16x8xbf16>, vector<2x16x16xf32> -> vector<2x16x16xf32>
    %cst_19 = arith.constant dense<0xFF800000> : vector<2x16xf32>
    %97 = vector.multi_reduction <maximumf>, %96, %cst_19 [2] : vector<2x16x16xf32> to vector<2x16xf32>
    %98 = vector.shape_cast %97 : vector<2x16xf32> to vector<2x16x1xf32>
    %99 = vector.broadcast %98 : vector<2x16x1xf32> to vector<2x16x16xf32>
    %100 = arith.subf %96, %99 : vector<2x16x16xf32>
    %101 = math.exp %100 : vector<2x16x16xf32>
    %cst_20 = arith.constant dense<0.000000e+00> : vector<2x16xf32>
    %102 = vector.multi_reduction <add>, %101, %cst_20 [2] : vector<2x16x16xf32> to vector<2x16xf32>
    %103 = vector.shape_cast %102 : vector<2x16xf32> to vector<2x16x1xf32>
    %104 = tpu.reciprocal %103 {approx = true} : vector<2x16x1xf32> -> vector<2x16x1xf32>
    %105 = vector.broadcast %104 : vector<2x16x1xf32> to vector<2x16x16xf32>
    %106 = arith.mulf %101, %105 : vector<2x16x16xf32>
    %107 = arith.truncf %106 : vector<2x16x16xf32> to vector<2x16x16xbf16>
    %cst_21 = arith.constant dense<0.000000e+00> : vector<2x16x8xf32>
    %108 = tpu.matmul %107, %95, %cst_21 {dimension_numbers = #tpu.dot_dimension_numbers<[2], [1], [1], [2], [0, 0, 0, 1, 1, 2], [0], [0]>} : vector<2x16x16xbf16>, vector<2x16x8xbf16>, vector<2x16x8xf32> -> vector<2x16x8xf32>
    %109 = vector.shape_cast %108 : vector<2x16x8xf32> to vector<32x8xf32>
    %110 = tpu.concatenate %49, %69, %89, %109 in 1 : vector<32x8xf32>, vector<32x8xf32>, vector<32x8xf32>, vector<32x8xf32> -> vector<32x32xf32>
    %111 = arith.truncf %110 : vector<32x32xf32> to vector<32x32xbf16>
    %cst_22 = arith.constant dense<0.000000e+00> : vector<32x32xf32>
    %112 = tpu.matmul %111, %11, %cst_22 {dimension_numbers = #tpu.dot_dimension_numbers<[1], [0], [0], [1], [0, 0, 1, 1], [], []>} : vector<32x32xbf16>, vector<32x32xbf16>, vector<32x32xf32> -> vector<32x32xf32>
    %113 = vector.broadcast %4 : vector<1x32xf32> to vector<32x32xf32>
    %114 = arith.addf %112, %113 : vector<32x32xf32>
    %115 = arith.truncf %114 : vector<32x32xf32> to vector<32x32xbf16>
    %cst_23 = arith.constant dense<0.000000e+00> : vector<32x32xf32>
    %116 = tpu.matmul %115, %12, %cst_23 {dimension_numbers = #tpu.dot_dimension_numbers<[1], [0], [0], [1], [0, 0, 1, 1], [], []>} : vector<32x32xbf16>, vector<32x32xbf16>, vector<32x32xf32> -> vector<32x32xf32>
    %117 = vector.broadcast %5 : vector<1x32xf32> to vector<32x32xf32>
    %118 = arith.addf %116, %117 : vector<32x32xf32>
    %cst_24 = arith.constant 0.000000e+00 : f32
    %119 = vector.broadcast %cst_24 : f32 to vector<32x32xf32>
    %120 = arith.maximumf %118, %119 : vector<32x32xf32>
    %121 = vector.shape_cast %120 : vector<32x32xf32> to vector<2x16x32xf32>
    %122 = vector.shape_cast %6 : vector<1x32xf32> to vector<1x1x32xf32>
    %123 = vector.broadcast %122 : vector<1x1x32xf32> to vector<2x16x32xf32>
    %124 = arith.mulf %121, %123 : vector<2x16x32xf32>
    %cst_25 = arith.constant dense<0.000000e+00> : vector<2x16xf32>
    %125 = vector.multi_reduction <add>, %124, %cst_25 [2] : vector<2x16x32xf32> to vector<2x16xf32>
    %c0_26 = arith.constant 0 : index
    %c0_27 = arith.constant 0 : index
    %c0_28 = arith.constant 0 : index
    %126 = vector.load %arg2[%c0_26, %c0_27, %c0_28] : memref<1x2x16xf32, #tpu.memory_space<vmem>>, vector<1x2x16xf32>
    %127 = vector.shape_cast %126 : vector<1x2x16xf32> to vector<2x16xf32>
    %128 = arith.addf %125, %127 : vector<2x16xf32>
    %c0_29 = arith.constant 0 : index
    %c0_30 = arith.constant 0 : index
    %c0_31 = arith.constant 0 : index
    %129 = vector.load %arg6[%c0_29, %c0_30, %c0_31] : memref<1x2x16xf32, #tpu.memory_space<vmem>>, vector<1x2x16xf32>
    %130 = vector.shape_cast %129 : vector<1x2x16xf32> to vector<2x16xf32>
    %131 = vector.shape_cast %128 : vector<2x16xf32> to vector<1x2x16xf32>
    tpu.vector_store %arg6[%c0_29, %c0_30, %c0_31], %131 {strides = array<i32>} : memref<1x2x16xf32, #tpu.memory_space<vmem>>, vector<1x2x16xf32>,
    %132 = arith.truncf %128 : vector<2x16xf32> to vector<2x16xbf16>
    %cst_32 = arith.constant dense<0.000000e+00> : vector<2x32xf32>
    %133 = tpu.matmul %132, %13, %cst_32 {dimension_numbers = #tpu.dot_dimension_numbers<[1], [0], [0], [1], [0, 0, 1, 1], [], []>} : vector<2x16xbf16>, vector<16x32xbf16>, vector<2x32xf32> -> vector<2x32xf32>
    %134 = vector.broadcast %7 : vector<1x32xf32> to vector<2x32xf32>
    %135 = arith.addf %133, %134 : vector<2x32xf32>
    %cst_33 = arith.constant 0.000000e+00 : f32
    %136 = vector.broadcast %cst_33 : f32 to vector<2x32xf32>
    %137 = arith.maximumf %135, %136 : vector<2x32xf32>
    %c0_34 = arith.constant 0 : index
    %c0_35 = arith.constant 0 : index
    %c0_36 = arith.constant 0 : index
    %138 = vector.load %arg7[%c0_34, %c0_35, %c0_36] : memref<1x2x32xf32, #tpu.memory_space<vmem>>, vector<1x2x32xf32>
    %139 = vector.shape_cast %138 : vector<1x2x32xf32> to vector<2x32xf32>
    %140 = vector.shape_cast %137 : vector<2x32xf32> to vector<1x2x32xf32>
    tpu.vector_store %arg7[%c0_34, %c0_35, %c0_36], %140 {strides = array<i32>} : memref<1x2x32xf32, #tpu.memory_space<vmem>>, vector<1x2x32xf32>,
    %c0_37 = arith.constant 0 : index
    %c0_38 = arith.constant 0 : index
    %141 = vector.load %arg3[%c0_37, %c0_38] : memref<10x1xf32, #tpu.memory_space<vmem>>, vector<10x1xf32>
    %142 = vector.broadcast %141 : vector<10x1xf32> to vector<10x16xf32>
    %143 = vector.broadcast %8 : vector<1x16xf32> to vector<10x16xf32>
    %144 = arith.mulf %142, %143 : vector<10x16xf32>
    %145 = vector.broadcast %9 : vector<1x16xf32> to vector<10x16xf32>
    %146 = arith.addf %144, %145 : vector<10x16xf32>
    %cst_39 = arith.constant 0.000000e+00 : f32
    %147 = vector.broadcast %cst_39 : f32 to vector<10x16xf32>
    %148 = arith.maximumf %146, %147 : vector<10x16xf32>
    %c0_40 = arith.constant 0 : index
    %c0_41 = arith.constant 0 : index
    %c0_42 = arith.constant 0 : index
    %149 = vector.load %arg8[%c0_40, %c0_41, %c0_42] : memref<1x10x16xf32, #tpu.memory_space<vmem>>, vector<1x10x16xf32>
    %150 = vector.shape_cast %149 : vector<1x10x16xf32> to vector<10x16xf32>
    %151 = vector.shape_cast %148 : vector<10x16xf32> to vector<1x10x16xf32>
    tpu.vector_store %arg8[%c0_40, %c0_41, %c0_42], %151 {strides = array<i32>} : memref<1x10x16xf32, #tpu.memory_space<vmem>>, vector<1x10x16xf32>,
    return
  }
  func.func @transform_0(%arg0: i32) -> (i32, i32) {
    %c0_i32 = arith.constant 0 : i32
    %c0_i32_0 = arith.constant 0 : i32
    return %arg0, %c0_i32 : i32, i32
  }
  func.func @transform_1(%arg0: i32) -> (i32, i32, i32) {
    %c0_i32 = arith.constant 0 : i32
    %c0_i32_0 = arith.constant 0 : i32
    %c0_i32_1 = arith.constant 0 : i32
    return %arg0, %c0_i32, %c0_i32_0 : i32, i32, i32
  }
  func.func @transform_2(%arg0: i32) -> (i32, i32) {
    %c0_i32 = arith.constant 0 : i32
    %c0_i32_0 = arith.constant 0 : i32
    %c0_i32_1 = arith.constant 0 : i32
    return %c0_i32, %c0_i32_0 : i32, i32
  }
  func.func @transform_3(%arg0: i32) -> (i32, i32) {
    %c0_i32 = arith.constant 0 : i32
    %c0_i32_0 = arith.constant 0 : i32
    %c0_i32_1 = arith.constant 0 : i32
    return %c0_i32, %c0_i32_0 : i32, i32
  }
  func.func @transform_4(%arg0: i32) -> (i32, i32) {
    %c0_i32 = arith.constant 0 : i32
    %c0_i32_0 = arith.constant 0 : i32
    %c0_i32_1 = arith.constant 0 : i32
    return %c0_i32, %c0_i32_0 : i32, i32
  }
  func.func @transform_5(%arg0: i32) -> (i32, i32, i32) {
    %c0_i32 = arith.constant 0 : i32
    %c0_i32_0 = arith.constant 0 : i32
    %c0_i32_1 = arith.constant 0 : i32
    return %arg0, %c0_i32, %c0_i32_0 : i32, i32, i32
  }
  func.func @transform_6(%arg0: i32) -> (i32, i32, i32) {
    %c0_i32 = arith.constant 0 : i32
    %c0_i32_0 = arith.constant 0 : i32
    %c0_i32_1 = arith.constant 0 : i32
    return %arg0, %c0_i32, %c0_i32_0 : i32, i32, i32
  }
  func.func @transform_7(%arg0: i32) -> (i32, i32, i32) {
    %c0_i32 = arith.constant 0 : i32
    %c0_i32_0 = arith.constant 0 : i32
    %c0_i32_1 = arith.constant 0 : i32
    return %arg0, %c0_i32, %c0_i32_0 : i32, i32, i32
  }
}

</mosaic_0001>

<llo_original>
// kernel: attention_gn_step.1
$region0: #{attention_gn_step.1}
  #allocation0 [shape = 'u32[]', space=smem, size = 0x4, offset = 0x4, fixed_abs, tag = 'smem constant byte address 0x4 - core index']
  #allocation1 [shape = 'u32[144,128]{1,0:T(1,128)}', space=vmem, size = 0x12000, scoped, tag = 'internal scratch']
  %s0 = inlined_call_operand.vmem [shape: f32[64,1], index: 0, kind: input, shape index: {}]
  %s1 = inlined_call_operand.vmem [shape: f32[2,2,16], index: 1, kind: input, shape index: {}]
  %s2 = inlined_call_operand.vmem [shape: f32[10,1], index: 2, kind: input, shape index: {}]
  %s3 = inlined_call_operand.vmem [shape: bf16[32,192], index: 3, kind: input, shape index: {}]
  %s4 = inlined_call_operand.vmem [shape: f32[8,32], index: 4, kind: input, shape index: {}]
  %s5 = inlined_call_operand.hbm [shape: f32[2,2,16], index: 5, kind: output, shape index: {0}]
  %s6 = inlined_call_operand.hbm [shape: f32[2,2,32], index: 6, kind: output, shape index: {1}]
  %s7 = inlined_call_operand.vmem [shape: f32[2,10,16], index: 7, kind: output, shape index: {2}]
  %8 = xla_tuple %s5, %s6, %s7
  %s9 = sld [smem:[#allocation0]]
  $region69: #{attention_gn_step.1} parent=0
    _
  %s11 = ssub.s32 1, %s9
  %s12 = scalar_select 0, %s11, %s9
  $region1: #{attention_gn_step.1} parent=0
    #allocation2 [shape = 'u8[2048]{0}', space=vmem, size = 0x800, scoped, tag = 'output window, operand 0']
    #allocation3 [shape = 's32[2]{0}', space=sflag, size = 0x8, scoped, tag = 'scoped memory for attention_gn_step.1']
    #allocation4 [shape = 'u8[2048]{0}', space=vmem, size = 0x800, scoped, tag = 'output window, operand 1']
    #allocation5 [shape = 's32[2]{0}', space=sflag, size = 0x8, scoped, tag = 'scoped memory for attention_gn_step.1']
    %13 = vsyncpa [#allocation3], 0
    %s14 = scalar_lea.sflag [#allocation3], 1
    %15 = vsyncpa %s14, 0
    %16 = vsyncpa [#allocation5], 0
    %s17 = scalar_lea.sflag [#allocation5], 1
    %18 = vsyncpa %s17, 0
    loop: start=0, step=1, limit=4
    $region2: #{attention_gn_step.1} parent=1 // loop_pre_header
      _
    $region3: #{attention_gn_step.1} parent=1 // loop_header
      %s20 = sphi 0, %s24
      %p21 = scmp.ge.s32.totalorder %s20, 4
      %s30 = sphi 0, %s32
      %s33 = sphi 0, %s30
      %s34 = sphi 0, %s33
      %s50 = sphi 0, %s34
      %s56 = sphi 0, %s58
      %s59 = sphi 0, %s56
      %s60 = sphi 0, %s59
      %s76 = sphi 0, %s60
      %s80 = sphi 0, %s80
      %s82 = sphi 0, %s80
      %s83 = sphi 0, %s82
      %s97 = sphi 0, %s83
      %s101 = sphi 0, %s101
      %s103 = sphi 0, %s101
      %s104 = sphi 0, %s103
      %s118 = sphi 0, %s104
      %s122 = sphi 0, %s122
      %s124 = sphi 0, %s122
      %s125 = sphi 0, %s124
      %s139 = sphi 0, %s125
      %s145 = sphi 0, %s147
      %s148 = sphi 0, %s145
      %s149 = sphi 0, %s148
      %s165 = sphi 0, %s149
      %s171 = sphi 0, %s173
      %s174 = sphi 0, %s171
      %s175 = sphi 0, %s174
      %s191 = sphi 0, %s175
      %s197 = sphi 0, %s199
      %s200 = sphi 0, %s197
      %s201 = sphi 0, %s200
      %s217 = sphi 0, %s201
    $region4: #{attention_gn_step.1} parent=1 // loop_header_branch
      %23 = sbr.rel (%p21) target = $region8
    $region5: #{attention_gn_step.1} parent=1 // loop_body
      %s25 = ssub.s32 %s20, 1
      %s26 = ssub.s32 %s20, 2
      %s27 = sadd.s32 %s20, 1
      %s28 = ssub.s32 %s20, %s27
      %p29 = scmp.eq.s32.totalorder %s28, 0
      %s31 = sadd.s32 %s30, 1
      %s32 = scalar_select %p29, %s30, %s31
      %p35 = pneg %p29
      %p36 = scmp.eq.s32.totalorder %s20, 1
      %p37 = por %p35, %p36
      %p38 = scmp.ne.s32.totalorder %s30, %s33
      %p39 = scmp.eq.s32.totalorder %s20, 0
      %p40 = por %p38, %p39
      %p41 = scmp.ne.s32.totalorder %s30, %s33
      %p42 = scmp.eq.s32.totalorder %s25, 1
      %p43 = por %p41, %p42
      %p44 = scmp.ne.s32.totalorder %s33, %s34
      %p45 = scmp.eq.s32.totalorder %s25, 0
      %p46 = por %p44, %p45
      %p47 = scmp.ne.s32.totalorder %s33, %s34
      %p48 = scmp.eq.s32.totalorder %s26, 1
      %p49 = por %p47, %p48
      %p51 = scmp.ne.s32.totalorder %s34, %s50
      %p52 = scmp.eq.s32.totalorder %s26, 0
      %p53 = por %p51, %p52
      %s54 = ssub.s32 %s20, %s27
      %p55 = scmp.eq.s32.totalorder %s54, 0
      %s57 = sadd.s32 %s56, 1
      %s58 = scalar_select %p55, %s56, %s57
      %p61 = pneg %p55
      %p62 = scmp.eq.s32.totalorder %s20, 1
      %p63 = por %p61, %p62
      %p64 = scmp.ne.s32.totalorder %s56, %s59
      %p65 = scmp.eq.s32.totalorder %s20, 0
      %p66 = por %p64, %p65
      %p67 = scmp.ne.s32.totalorder %s56, %s59
      %p68 = scmp.eq.s32.totalorder %s25, 1
      %p69 = por %p67, %p68
      %p70 = scmp.ne.s32.totalorder %s59, %s60
      %p71 = scmp.eq.s32.totalorder %s25, 0
      %p72 = por %p70, %p71
      %p73 = scmp.ne.s32.totalorder %s59, %s60
      %p74 = scmp.eq.s32.totalorder %s26, 1
      %p75 = por %p73, %p74
      %p77 = scmp.ne.s32.totalorder %s60, %s76
      %p78 = scmp.eq.s32.totalorder %s26, 0
      %p79 = por %p77, %p78
      %s81 = sadd.s32 %s80, 1
      %p84 = scmp.eq.s32.totalorder %s20, 1
      %p85 = scmp.ne.s32.totalorder %s80, %s82
      %p86 = scmp.eq.s32.totalorder %s20, 0
      %p87 = por %p85, %p86
      %p88 = scmp.ne.s32.totalorder %s80, %s82
      %p89 = scmp.eq.s32.totalorder %s25, 1
      %p90 = por %p88, %p89
      %p91 = scmp.ne.s32.totalorder %s82, %s83
      %p92 = scmp.eq.s32.totalorder %s25, 0
      %p93 = por %p91, %p92
      %p94 = scmp.ne.s32.totalorder %s82, %s83
      %p95 = scmp.eq.s32.totalorder %s26, 1
      %p96 = por %p94, %p95
      %p98 = scmp.ne.s32.totalorder %s83, %s97
      %p99 = scmp.eq.s32.totalorder %s26, 0
      %p100 = por %p98, %p99
      %s102 = sadd.s32 %s101, 1
      %p105 = scmp.eq.s32.totalorder %s20, 1
      %p106 = scmp.ne.s32.totalorder %s101, %s103
      %p107 = scmp.eq.s32.totalorder %s20, 0
      %p108 = por %p106, %p107
      %p109 = scmp.ne.s32.totalorder %s101, %s103
      %p110 = scmp.eq.s32.totalorder %s25, 1
      %p111 = por %p109, %p110
      %p112 = scmp.ne.s32.totalorder %s103, %s104
      %p113 = scmp.eq.s32.totalorder %s25, 0
      %p114 = por %p112, %p113
      %p115 = scmp.ne.s32.totalorder %s103, %s104
      %p116 = scmp.eq.s32.totalorder %s26, 1
      %p117 = por %p115, %p116
      %p119 = scmp.ne.s32.totalorder %s104, %s118
      %p120 = scmp.eq.s32.totalorder %s26, 0
      %p121 = por %p119, %p120
      %s123 = sadd.s32 %s122, 1
      %p126 = scmp.eq.s32.totalorder %s20, 1
      %p127 = scmp.ne.s32.totalorder %s122, %s124
      %p128 = scmp.eq.s32.totalorder %s20, 0
      %p129 = por %p127, %p128
      %p130 = scmp.ne.s32.totalorder %s122, %s124
      %p131 = scmp.eq.s32.totalorder %s25, 1
      %p132 = por %p130, %p131
      %p133 = scmp.ne.s32.totalorder %s124, %s125
      %p134 = scmp.eq.s32.totalorder %s25, 0
      %p135 = por %p133, %p134
      %p136 = scmp.ne.s32.totalorder %s124, %s125
      %p137 = scmp.eq.s32.totalorder %s26, 1
      %p138 = por %p136, %p137
      %p140 = scmp.ne.s32.totalorder %s125, %s139
      %p141 = scmp.eq.s32.totalorder %s26, 0
      %p142 = por %p140, %p141
      %s143 = ssub.s32 %s20, %s27
      %p144 = scmp.eq.s32.totalorder %s143, 0
      %s146 = sadd.s32 %s145, 1
      %s147 = scalar_select %p144, %s145, %s146
      %p150 = pneg %p144
      %p151 = scmp.eq.s32.totalorder %s20, 1
      %p152 = por %p150, %p151
      %p153 = scmp.ne.s32.totalorder %s145, %s148
      %p154 = scmp.eq.s32.totalorder %s20, 0
      %p155 = por %p153, %p154
      %p156 = scmp.ne.s32.totalorder %s145, %s148
      %p157 = scmp.eq.s32.totalorder %s25, 1
      %p158 = por %p156, %p157
      %p159 = scmp.ne.s32.totalorder %s148, %s149
      %p160 = scmp.eq.s32.totalorder %s25, 0
      %p161 = por %p159, %p160
      %p162 = scmp.ne.s32.totalorder %s148, %s149
      %p163 = scmp.eq.s32.totalorder %s26, 1
      %p164 = por %p162, %p163
      %p166 = scmp.ne.s32.totalorder %s149, %s165
      %p167 = scmp.eq.s32.totalorder %s26, 0
      %p168 = por %p166, %p167
      %s169 = ssub.s32 %s20, %s27
      %p170 = scmp.eq.s32.totalorder %s169, 0
      %s172 = sadd.s32 %s171, 1
      %s173 = scalar_select %p170, %s171, %s172
      %p176 = pneg %p170
      %p177 = scmp.eq.s32.totalorder %s20, 1
      %p178 = por %p176, %p177
      %p179 = scmp.ne.s32.totalorder %s171, %s174
      %p180 = scmp.eq.s32.totalorder %s20, 0
      %p181 = por %p179, %p180
      %p182 = scmp.ne.s32.totalorder %s171, %s174
      %p183 = scmp.eq.s32.totalorder %s25, 1
      %p184 = por %p182, %p183
      %p185 = scmp.ne.s32.totalorder %s174, %s175
      %p186 = scmp.eq.s32.totalorder %s25, 0
      %p187 = por %p185, %p186
      %p188 = scmp.ne.s32.totalorder %s174, %s175
      %p189 = scmp.eq.s32.totalorder %s26, 1
      %p190 = por %p188, %p189
      %p192 = scmp.ne.s32.totalorder %s175, %s191
      %p193 = scmp.eq.s32.totalorder %s26, 0
      %p194 = por %p192, %p193
      %s195 = ssub.s32 %s20, %s27
      %p196 = scmp.eq.s32.totalorder %s195, 0
      %s198 = sadd.s32 %s197, 1
      %s199 = scalar_select %p196, %s197, %s198
      %p202 = pneg %p196
      %p203 = scmp.eq.s32.totalorder %s20, 1
      %p204 = por %p202, %p203
      %p205 = scmp.ne.s32.totalorder %s197, %s200
      %p206 = scmp.eq.s32.totalorder %s20, 0
      %p207 = por %p205, %p206
      %p208 = scmp.ne.s32.totalorder %s197, %s200
      %p209 = scmp.eq.s32.totalorder %s25, 1
      %p210 = por %p208, %p209
      %p211 = scmp.ne.s32.totalorder %s200, %s201
      %p212 = scmp.eq.s32.totalorder %s25, 0
      %p213 = por %p211, %p212
      %p214 = scmp.ne.s32.totalorder %s200, %s201
      %p215 = scmp.eq.s32.totalorder %s26, 1
      %p216 = por %p214, %p215
      %p218 = scmp.ne.s32.totalorder %s201, %s217
      %p219 = scmp.eq.s32.totalorder %s26, 0
      %p220 = por %p218, %p219
      %p221 = scmp.le.s32.totalorder 1, %s20
      %p222 = scmp.lt.s32.totalorder %s20, 3
      %p223 = pnand %p221, %p222
      %p224 = pneg %p223
      // Predicated region
      $region9: #{attention_gn_step.1} parent=5 // pred_check
        _
      $region10: #{attention_gn_step.1} parent=5 // pred_check_branch
        %226 = sbr.rel (%p223) target = $region12
      $region11: #{attention_gn_step.1} parent=5 // pred_region
        %s227 = ssub.s32 %s20, 1
        // Predicated region
        $region13: #{attention_gn_step.1} parent=11 // pred_check
          %p228 = pneg %p93
        $region14: #{attention_gn_step.1} parent=11 // pred_check_branch
          %230 = sbr.rel (%p228) target = $region16
        $region15: #{attention_gn_step.1} parent=11 // pred_region
          _
        $region16: #{attention_gn_step.1} parent=11 // pred_fallthru
          _
        // Predicated region
        $region17: #{attention_gn_step.1} parent=11 // pred_check
          %p231 = pneg %p114
        $region18: #{attention_gn_step.1} parent=11 // pred_check_branch
          %233 = sbr.rel (%p231) target = $region20
        $region19: #{attention_gn_step.1} parent=11 // pred_region
          _
        $region20: #{attention_gn_step.1} parent=11 // pred_fallthru
          _
        // Predicated region
        $region21: #{attention_gn_step.1} parent=11 // pred_check
          %p234 = pneg %p135
        $region22: #{attention_gn_step.1} parent=11 // pred_check_branch
          %236 = sbr.rel (%p234) target = $region24
        $region23: #{attention_gn_step.1} parent=11 // pred_region
          _
        $region24: #{attention_gn_step.1} parent=11 // pred_fallthru
          _
      $region12: #{attention_gn_step.1} parent=5 // pred_fallthru
        _
      %p237 = scmp.lt.s32.totalorder %s20, 2
      // Predicated region
      $region25: #{attention_gn_step.1} parent=5 // pred_check
        %p238 = pneg %p237
      $region26: #{attention_gn_step.1} parent=5 // pred_check_branch
        %240 = sbr.rel (%p238) target = $region28
      $region27: #{attention_gn_step.1} parent=5 // pred_region
        // Predicated region
        $region29: #{attention_gn_step.1} parent=27 // pred_check
          %p241 = pneg %p40
        $region30: #{attention_gn_step.1} parent=27 // pred_check_branch
          %243 = sbr.rel (%p241) target = $region32
        $region31: #{attention_gn_step.1} parent=27 // pred_region
          %s244 = smul.u32 4, %s20
          %p245 = scmp.lt.s32.totalorder %s244, 7
          %s246 = scalar_select %p245, %s244, 7
          %s247 = smul.addr %s246, 8
          %s248 = scalar_lea.vmem %s0, %s247
          %s249 = smul.u32 4, %s20
        $region32: #{attention_gn_step.1} parent=27 // pred_fallthru
          _
        // Predicated region
        $region33: #{attention_gn_step.1} parent=27 // pred_check
          %p250 = pneg %p66
        $region34: #{attention_gn_step.1} parent=27 // pred_check_branch
          %252 = sbr.rel (%p250) target = $region36
        $region35: #{attention_gn_step.1} parent=27 // pred_region
          %p253 = scmp.lt.s32.totalorder %s20, 1
          %s254 = scalar_select %p253, %s20, 1
          %s255 = smul.addr %s254, 2
          %s256 = scalar_lea.vmem %s1, %s255
        $region36: #{attention_gn_step.1} parent=27 // pred_fallthru
          _
      $region28: #{attention_gn_step.1} parent=5 // pred_fallthru
        _
      %p257 = scmp.le.s32.totalorder 1, %s20
      %p258 = scmp.lt.s32.totalorder %s20, 3
      %p259 = pnand %p257, %p258
      %p260 = pneg %p259
      // Predicated region
      $region37: #{attention_gn_step.1} parent=5 // pred_check
        _
      $region38: #{attention_gn_step.1} parent=5 // pred_check_branch
        %262 = sbr.rel (%p259) target = $region40
      $region39: #{attention_gn_step.1} parent=5 // pred_region
        %s263 = ssub.s32 %s20, 1
        %s264 = smul.u32 4, %s25
        %p265 = scmp.lt.s32.totalorder %s264, 7
        %s266 = scalar_select %p265, %s264, 7
        %s267 = smul.addr %s266, 8
        %s268 = scalar_lea.vmem %s0, %s267
        %p269 = pneg %p46
        %p270 = pneg %p43
        %p271 = scmp.lt.s32.totalorder %s25, 1
        %s272 = scalar_select %p271, %s25, 1
        %s273 = smul.addr %s272, 2
        %s274 = scalar_lea.vmem %s1, %s273
        %p275 = pneg %p72
        %p276 = pneg %p69
        %p277 = pneg %p93
        %p278 = pneg %p90
        %p279 = pneg %p114
        %p280 = pneg %p111
        %p281 = pneg %p135
        %p282 = pneg %p132
        %p283 = pneg %p161
        %p284 = pneg %p158
        %s285 = sand.u32 %s148, 1
        %s286 = scalar_lea.sflag [#allocation3], %s285
        %s287 = sand.u32 %s148, 1
        %s288 = smul.addr %s287, 2
        %s289 = scalar_lea.vmem [#allocation2], %s288
        %p290 = pneg %p187
        %p291 = pneg %p184
        %s292 = sand.u32 %s174, 1
        %s293 = scalar_lea.sflag [#allocation5], %s292
        %s294 = sand.u32 %s174, 1
        %s295 = smul.addr %s294, 2
        %s296 = scalar_lea.vmem [#allocation4], %s295
        %p297 = pneg %p213
        %p298 = pneg %p210
        %p299 = scmp.lt.s32.totalorder %s25, 1
        %s300 = scalar_select %p299, %s25, 1
        %s301 = smul.addr %s300, 2
        %s302 = smul.addr %s301, 8
        %s303 = scalar_lea.vmem %s7, %s302
        %s304 = smul.u32 4, %s25
        %p305 = scmp.lt.s32.totalorder %s304, 7
        %s306 = scalar_select %p305, %s304, 7
        %s307 = smul.addr %s306, 8
        %s308 = scalar_lea.vmem %s0, %s307
        %s309 = smul.u32 4, %s25
        %p310 = scmp.lt.s32.totalorder %s25, 1
        %s311 = scalar_select %p310, %s25, 1
        %s312 = smul.addr %s311, 2
        %s313 = scalar_lea.vmem %s1, %s312
        %p314 = scmp.lt.s32.totalorder %s25, 1
        %s315 = scalar_select %p314, %s25, 1
        %s316 = smul.addr %s315, 2
        %s317 = smul.addr %s316, 8
        %s318 = scalar_lea.vmem %s7, %s317
        %v320 = vld [vmem:[%s3] sm:$0xff]
        %v321 = vld [vmem:[%s3 + $0x8] sm:$0xff]
        %v322 = vld [vmem:[%s3 + $0x10] sm:$0xff]
        %v323 = vld [vmem:[%s3 + $0x18] sm:$0xff]
        %v324 = vld [vmem:[%s4] sm:$0xff]
        %v325 = vld [vmem:[%s308] sm:$0xff]
        %v326 = vld [vmem:[%s308 + $0x8] sm:$0xff]
        %v327 = vld [vmem:[%s308 + $0x10] sm:$0xff]
        %v328 = vld [vmem:[%s308 + $0x18] sm:$0xff]
        %330 = vset.pattern.permute.xlu0 0
        %331 = vperm.xlu0 %330, %v325
        %v332 = vpop.permute.xlu0 %331
        %335 = vset.pattern.permute.xlu0 0
        %336 = vperm.xlu0 %335, %v326
        %v337 = vpop.permute.xlu0 %336
        %340 = vset.pattern.permute.xlu0 0
        %341 = vperm.xlu0 %340, %v327
        %v342 = vpop.permute.xlu0 %341
        %345 = vset.pattern.permute.xlu0 0
        %346 = vperm.xlu0 %345, %v328
        %v347 = vpop.permute.xlu0 %346
        %v349 = vlaneseq
        %v350 = vshrl.u32 %v349, 7
        %v351 = vsub.s32 0, %v350
        %v352 = vrot.slane %v324, %v351
        %v353 = vmul.f32 %v332, %v352
        %v354 = vmul.f32 %v337, %v352
        %v355 = vmul.f32 %v342, %v352
        %v356 = vmul.f32 %v347, %v352
        %v357 = vlaneseq
        %v358 = vshrl.u32 %v357, 7
        %v359 = vsub.s32 1, %v358
        %v360 = vrot.slane %v324, %v359
        %v361 = vadd.f32 %v353, %v360
        %v362 = vadd.f32 %v354, %v360
        %v363 = vadd.f32 %v355, %v360
        %v364 = vadd.f32 %v356, %v360
        %v365 = vmax.f32 %v361, 0.0
        %v366 = vmax.f32 %v362, 0.0
        %v367 = vmax.f32 %v363, 0.0
        %v368 = vmax.f32 %v364, 0.0
        %v369 = vpack.c.bf16 %v366, %v365
        %v370 = vpack.c.bf16 %v368, %v367
        %v375 = vunpack.c.l.b16 %v320
        %v376 = vunpack.c.l.b16 %v321
        %v377 = vunpack.c.l.b16 %v322
        %v378 = vunpack.c.l.b16 %v323
        %v379 = vpack.c.b16 %v376, %v375
        %v380 = vpack.c.b16 %v378, %v377
        %vm383 = vcmask 261120
        %v385 = vsel %vm383, %v369, 0
        %v388 = vsel %vm383, %v370, 0
        %390 = vmatprep.subr.bf16.mxu0 0
        %391 = vmatpush1.bf16.msra.mxu0 0
        %392 = vmatprep.subr.bf16.mxu0 0
        %393 = vmatpush1.bf16.msra.mxu0 0
        %394 = vmatprep.subr.bf16.mxu0 0
        %395 = vmatpush1.bf16.msra.mxu0 0
        %396 = vmatprep.subr.bf16.mxu0 0
        %397 = vmatpush1.bf16.msra.mxu0 0
        %398 = vmatprep.subr.bf16.mxu0 0
        %399 = vmatpush1.bf16.msra.mxu0 0
        %400 = vmatprep.subr.bf16.mxu0 0
        %401 = vmatpush1.bf16.msra.mxu0 0
        %402 = vmatprep.subr.bf16.mxu0 0
        %403 = vmatpush1.bf16.msra.mxu0 %v380
        %404 = vmatprep.subr.bf16.mxu0 0
        %405 = vmatpush1.bf16.msra.mxu0 %v379
        %406 = vmatprep.subr.bf16.mxu0 0
        %407 = vmatpush2.bf16.msra.mxu0 0
        %408 = vmatprep.subr.bf16.mxu0 0
        %409 = vmatpush2.bf16.msra.mxu0 0
        %410 = vmatprep.subr.bf16.mxu0 0
        %411 = vmatpush2.bf16.msra.mxu0 0
        %412 = vmatprep.subr.bf16.mxu0 0
        %413 = vmatpush2.bf16.msra.mxu0 0
        %414 = vmatprep.subr.bf16.mxu0 0
        %415 = vmatpush2.bf16.msra.mxu0 0
        %416 = vmatprep.subr.bf16.mxu0 0
        %417 = vmatpush2.bf16.msra.mxu0 0
        %418 = vmatprep.subr.bf16.mxu0 0
        %419 = vmatpush2.bf16.msra.mxu0 0
        %420 = vmatprep.subr.bf16.mxu0 0
        %421 = vmatpush2.bf16.msra.mxu0 0
        %422 = vmatprep.mubr.bf16.mxu0 0
        %423 = vmatmul.mubr.bf16.gmra.mxu0 %v385
        %v424 = vpop.f32.mrf.mxu0
        %v425 = vadd.f32 0.0, %v424
        %v426 = vpop.f32.mrf.mxu0
        %v427 = vpop.f32.mrf.mxu0
        %v428 = vadd.f32 0.0, %v427
        %v429 = vpop.f32.mrf.mxu0
        %430 = vmatprep.mubr.bf16.mxu0 0
        %431 = vmatmul.mubr.bf16.gmra.mxu0 %v388
        %v432 = vpop.f32.mrf.mxu0
        %v433 = vadd.f32 0.0, %v432
        %v434 = vpop.f32.mrf.mxu0
        %v435 = vpop.f32.mrf.mxu0
        %v436 = vadd.f32 0.0, %v435
        %v437 = vpop.f32.mrf.mxu0
        %438 = vdwg.mxu0
        %v439 = vpack.c.bf16 %v428, %v425
        %v440 = vpack.c.bf16 %v436, %v433
        %442 = vrot.lane.b32.xlu0 %v439, 96
        %v443 = vpop.permute.xlu0 %442
        %vm444 = vcmask 64512
        %v446 = vsel %vm444, %v439, 0
        %v449 = vsel %vm444, %v443, 0
        %451 = vmatprep.subr.bf16.mxu0 0
        %452 = vmatpush1.bf16.xpose.msra.mxu0 0
        %453 = vmatprep.subr.bf16.mxu0 0
        %454 = vmatpush1.bf16.xpose.msra.mxu0 0
        %455 = vmatprep.subr.bf16.mxu0 0
        %456 = vmatpush1.bf16.xpose.msra.mxu0 0
        %457 = vmatprep.subr.bf16.mxu0 0
        %458 = vmatpush1.bf16.xpose.msra.mxu0 0
        %459 = vmatprep.subr.bf16.mxu0 0
        %460 = vmatpush1.bf16.xpose.msra.mxu0 0
        %461 = vmatprep.subr.bf16.mxu0 0
        %462 = vmatpush1.bf16.xpose.msra.mxu0 0
        %463 = vmatprep.subr.bf16.mxu0 0
        %464 = vmatpush1.bf16.xpose.msra.mxu0 0
        %465 = vmatprep.subr.bf16.mxu0 0
        %466 = vmatpush1.bf16.xpose.msra.mxu0 %v449
        %467 = vmatprep.subr.bf16.mxu0 0
        %468 = vmatpush2.bf16.xpose.msra.mxu0 0
        %469 = vmatprep.subr.bf16.mxu0 0
        %470 = vmatpush2.bf16.xpose.msra.mxu0 0
        %471 = vmatprep.subr.bf16.mxu0 0
        %472 = vmatpush2.bf16.xpose.msra.mxu0 0
        %473 = vmatprep.subr.bf16.mxu0 0
        %474 = vmatpush2.bf16.xpose.msra.mxu0 0
        %475 = vmatprep.subr.bf16.mxu0 0
        %476 = vmatpush2.bf16.xpose.msra.mxu0 0
        %477 = vmatprep.subr.bf16.mxu0 0
        %478 = vmatpush2.bf16.xpose.msra.mxu0 0
        %479 = vmatprep.subr.bf16.mxu0 0
        %480 = vmatpush2.bf16.xpose.msra.mxu0 0
        %481 = vmatprep.subr.bf16.mxu0 0
        %482 = vmatpush2.bf16.xpose.msra.mxu0 0
        %483 = vmatprep.mubr.bf16.mxu0 0
        %484 = vmatmul.mubr.bf16.gmra.mxu0 %v446
        %v485 = vpop.f32.mrf.mxu0
        %v486 = vadd.f32 0.0, %v485
        %v487 = vpop.f32.mrf.mxu0
        %v488 = vpop.f32.mrf.mxu0
        %v489 = vadd.f32 0.0, %v488
        %v490 = vpop.f32.mrf.mxu0
        %491 = vdwg.mxu0
        %493 = vrot.lane.b32.xlu0 %v440, 96
        %v494 = vpop.permute.xlu0 %493
        %v496 = vsel %vm444, %v440, 0
        %v499 = vsel %vm444, %v494, 0
        %501 = vmatprep.subr.bf16.mxu0 0
        %502 = vmatpush1.bf16.xpose.msra.mxu0 0
        %503 = vmatprep.subr.bf16.mxu0 0
        %504 = vmatpush1.bf16.xpose.msra.mxu0 0
        %505 = vmatprep.subr.bf16.mxu0 0
        %506 = vmatpush1.bf16.xpose.msra.mxu0 0
        %507 = vmatprep.subr.bf16.mxu0 0
        %508 = vmatpush1.bf16.xpose.msra.mxu0 0
        %509 = vmatprep.subr.bf16.mxu0 0
        %510 = vmatpush1.bf16.xpose.msra.mxu0 0
        %511 = vmatprep.subr.bf16.mxu0 0
        %512 = vmatpush1.bf16.xpose.msra.mxu0 0
        %513 = vmatprep.subr.bf16.mxu0 0
        %514 = vmatpush1.bf16.xpose.msra.mxu0 0
        %515 = vmatprep.subr.bf16.mxu0 0
        %516 = vmatpush1.bf16.xpose.msra.mxu0 %v499
        %517 = vmatprep.subr.bf16.mxu0 0
        %518 = vmatpush2.bf16.xpose.msra.mxu0 0
        %519 = vmatprep.subr.bf16.mxu0 0
        %520 = vmatpush2.bf16.xpose.msra.mxu0 0
        %521 = vmatprep.subr.bf16.mxu0 0
        %522 = vmatpush2.bf16.xpose.msra.mxu0 0
        %523 = vmatprep.subr.bf16.mxu0 0
        %524 = vmatpush2.bf16.xpose.msra.mxu0 0
        %525 = vmatprep.subr.bf16.mxu0 0
        %526 = vmatpush2.bf16.xpose.msra.mxu0 0
        %527 = vmatprep.subr.bf16.mxu0 0
        %528 = vmatpush2.bf16.xpose.msra.mxu0 0
        %529 = vmatprep.subr.bf16.mxu0 0
        %530 = vmatpush2.bf16.xpose.msra.mxu0 0
        %531 = vmatprep.subr.bf16.mxu0 0
        %532 = vmatpush2.bf16.xpose.msra.mxu0 0
        %533 = vmatprep.mubr.bf16.mxu0 0
        %534 = vmatmul.mubr.bf16.gmra.mxu0 %v496
        %v535 = vpop.f32.mrf.mxu0
        %v536 = vadd.f32 0.0, %v535
        %v537 = vpop.f32.mrf.mxu0
        %v538 = vpop.f32.mrf.mxu0
        %v539 = vadd.f32 0.0, %v538
        %v540 = vpop.f32.mrf.mxu0
        %541 = vdwg.mxu0
        %vm542 = vcmask 130048
        %v543 = vsel %vm542, %v486, -inf
        %544 = vmax.xlane.f32.xlu0 %v543
        %v545 = vpop.xlane.xlu0 %544
        %v546 = vsel %vm542, %v489, -inf
        %547 = vmax.xlane.f32.xlu0 %v546
        %v548 = vpop.xlane.xlu0 %547
        %v549 = vsel %vm542, %v536, -inf
        %550 = vmax.xlane.f32.xlu0 %v549
        %v551 = vpop.xlane.xlu0 %550
        %v552 = vsel %vm542, %v539, -inf
        %553 = vmax.xlane.f32.xlu0 %v552
        %v554 = vpop.xlane.xlu0 %553
        %v555 = vsub.f32 %v486, %v545
        %v556 = vsub.f32 %v489, %v548
        %v557 = vsub.f32 %v536, %v551
        %v558 = vsub.f32 %v539, %v554
        %v559 = vmul.f32 %v555, 1.442695
        %v560 = vpow.pop %v559
        %v561 = vmul.f32 %v556, 1.442695
        %v562 = vpow.pop %v561
        %v563 = vmul.f32 %v557, 1.442695
        %v564 = vpow.pop %v563
        %v565 = vmul.f32 %v558, 1.442695
        %v566 = vpow.pop %v565
        %v567 = vsel %vm542, %v560, 0.0
        %568 = vadd.xlane.f32.xlu0 %v567
        %v569 = vpop.xlane.xlu0 %568
        %v570 = vsel %vm542, %v562, 0.0
        %571 = vadd.xlane.f32.xlu0 %v570
        %v572 = vpop.xlane.xlu0 %571
        %v573 = vsel %vm542, %v564, 0.0
        %574 = vadd.xlane.f32.xlu0 %v573
        %v575 = vpop.xlane.xlu0 %574
        %v576 = vsel %vm542, %v566, 0.0
        %577 = vadd.xlane.f32.xlu0 %v576
        %v578 = vpop.xlane.xlu0 %577
        %v579 = vrcp.pop %v569
        %v580 = vrcp.pop %v572
        %v581 = vrcp.pop %v575
        %v582 = vrcp.pop %v578
        %v583 = vmul.f32 %v560, %v579
        %v584 = vmul.f32 %v562, %v580
        %v585 = vmul.f32 %v564, %v581
        %v586 = vmul.f32 %v566, %v582
        %v587 = vpack.c.bf16 %v584, %v583
        %v588 = vpack.c.bf16 %v586, %v585
        %589 = vrot.lane.b32.xlu0 %v439, 64
        %v590 = vpop.permute.xlu0 %589
        %v593 = vsel %vm542, %v587, 0
        %595 = vmatprep.subr.bf16.mxu0 0
        %596 = vmatpush1.bf16.msra.mxu0 0
        %597 = vmatprep.subr.bf16.mxu0 0
        %598 = vmatpush1.bf16.msra.mxu0 0
        %599 = vmatprep.subr.bf16.mxu0 0
        %600 = vmatpush1.bf16.msra.mxu0 0
        %601 = vmatprep.subr.bf16.mxu0 0
        %602 = vmatpush1.bf16.msra.mxu0 0
        %603 = vmatprep.subr.bf16.mxu0 0
        %604 = vmatpush1.bf16.msra.mxu0 0
        %605 = vmatprep.subr.bf16.mxu0 0
        %606 = vmatpush1.bf16.msra.mxu0 0
        %607 = vmatprep.subr.bf16.mxu0 0
        %608 = vmatpush1.bf16.msra.mxu0 0
        %609 = vmatprep.subr.bf16.mxu0 0
        %610 = vmatpush1.bf16.msra.mxu0 %v590
        %611 = vmatprep.subr.bf16.mxu0 0
        %612 = vmatpush2.bf16.msra.mxu0 0
        %613 = vmatprep.subr.bf16.mxu0 0
        %614 = vmatpush2.bf16.msra.mxu0 0
        %615 = vmatprep.subr.bf16.mxu0 0
        %616 = vmatpush2.bf16.msra.mxu0 0
        %617 = vmatprep.subr.bf16.mxu0 0
        %618 = vmatpush2.bf16.msra.mxu0 0
        %619 = vmatprep.subr.bf16.mxu0 0
        %620 = vmatpush2.bf16.msra.mxu0 0
        %621 = vmatprep.subr.bf16.mxu0 0
        %622 = vmatpush2.bf16.msra.mxu0 0
        %623 = vmatprep.subr.bf16.mxu0 0
        %624 = vmatpush2.bf16.msra.mxu0 0
        %625 = vmatprep.subr.bf16.mxu0 0
        %626 = vmatpush2.bf16.msra.mxu0 0
        %627 = vmatprep.mubr.bf16.mxu0 0
        %628 = vmatmul.mubr.bf16.gmra.mxu0 %v593
        %v629 = vpop.f32.mrf.mxu0
        %v630 = vadd.f32 0.0, %v629
        %v631 = vpop.f32.mrf.mxu0
        %v632 = vpop.f32.mrf.mxu0
        %v633 = vadd.f32 0.0, %v632
        %v634 = vpop.f32.mrf.mxu0
        %635 = vdwg.mxu0
        %636 = vrot.lane.b32.xlu0 %v440, 64
        %v637 = vpop.permute.xlu0 %636
        %v640 = vsel %vm542, %v588, 0
        %642 = vmatprep.subr.bf16.mxu0 0
        %643 = vmatpush1.bf16.msra.mxu0 0
        %644 = vmatprep.subr.bf16.mxu0 0
        %645 = vmatpush1.bf16.msra.mxu0 0
        %646 = vmatprep.subr.bf16.mxu0 0
        %647 = vmatpush1.bf16.msra.mxu0 0
        %648 = vmatprep.subr.bf16.mxu0 0
        %649 = vmatpush1.bf16.msra.mxu0 0
        %650 = vmatprep.subr.bf16.mxu0 0
        %651 = vmatpush1.bf16.msra.mxu0 0
        %652 = vmatprep.subr.bf16.mxu0 0
        %653 = vmatpush1.bf16.msra.mxu0 0
        %654 = vmatprep.subr.bf16.mxu0 0
        %655 = vmatpush1.bf16.msra.mxu0 0
        %656 = vmatprep.subr.bf16.mxu0 0
        %657 = vmatpush1.bf16.msra.mxu0 %v637
        %658 = vmatprep.subr.bf16.mxu0 0
        %659 = vmatpush2.bf16.msra.mxu0 0
        %660 = vmatprep.subr.bf16.mxu0 0
        %661 = vmatpush2.bf16.msra.mxu0 0
        %662 = vmatprep.subr.bf16.mxu0 0
        %663 = vmatpush2.bf16.msra.mxu0 0
        %664 = vmatprep.subr.bf16.mxu0 0
        %665 = vmatpush2.bf16.msra.mxu0 0
        %666 = vmatprep.subr.bf16.mxu0 0
        %667 = vmatpush2.bf16.msra.mxu0 0
        %668 = vmatprep.subr.bf16.mxu0 0
        %669 = vmatpush2.bf16.msra.mxu0 0
        %670 = vmatprep.subr.bf16.mxu0 0
        %671 = vmatpush2.bf16.msra.mxu0 0
        %672 = vmatprep.subr.bf16.mxu0 0
        %673 = vmatpush2.bf16.msra.mxu0 0
        %674 = vmatprep.mubr.bf16.mxu0 0
        %675 = vmatmul.mubr.bf16.gmra.mxu0 %v640
        %v676 = vpop.f32.mrf.mxu0
        %v677 = vadd.f32 0.0, %v676
        %v678 = vpop.f32.mrf.mxu0
        %v679 = vpop.f32.mrf.mxu0
        %v680 = vadd.f32 0.0, %v679
        %v681 = vpop.f32.mrf.mxu0
        %682 = vdwg.mxu0
        %683 = vrot.lane.b32.xlu0 %v439, 120
        %v684 = vpop.permute.xlu0 %683
        %685 = vrot.lane.b32.xlu0 %v439, 88
        %v686 = vpop.permute.xlu0 %685
        %v688 = vsel %vm444, %v684, 0
        %v691 = vsel %vm444, %v686, 0
        %693 = vmatprep.subr.bf16.mxu0 0
        %694 = vmatpush1.bf16.xpose.msra.mxu0 0
        %695 = vmatprep.subr.bf16.mxu0 0
        %696 = vmatpush1.bf16.xpose.msra.mxu0 0
        %697 = vmatprep.subr.bf16.mxu0 0
        %698 = vmatpush1.bf16.xpose.msra.mxu0 0
        %699 = vmatprep.subr.bf16.mxu0 0
        %700 = vmatpush1.bf16.xpose.msra.mxu0 0
        %701 = vmatprep.subr.bf16.mxu0 0
        %702 = vmatpush1.bf16.xpose.msra.mxu0 0
        %703 = vmatprep.subr.bf16.mxu0 0
        %704 = vmatpush1.bf16.xpose.msra.mxu0 0
        %705 = vmatprep.subr.bf16.mxu0 0
        %706 = vmatpush1.bf16.xpose.msra.mxu0 0
        %707 = vmatprep.subr.bf16.mxu0 0
        %708 = vmatpush1.bf16.xpose.msra.mxu0 %v691
        %709 = vmatprep.subr.bf16.mxu0 0
        %710 = vmatpush2.bf16.xpose.msra.mxu0 0
        %711 = vmatprep.subr.bf16.mxu0 0
        %712 = vmatpush2.bf16.xpose.msra.mxu0 0
        %713 = vmatprep.subr.bf16.mxu0 0
        %714 = vmatpush2.bf16.xpose.msra.mxu0 0
        %715 = vmatprep.subr.bf16.mxu0 0
        %716 = vmatpush2.bf16.xpose.msra.mxu0 0
        %717 = vmatprep.subr.bf16.mxu0 0
        %718 = vmatpush2.bf16.xpose.msra.mxu0 0
        %719 = vmatprep.subr.bf16.mxu0 0
        %720 = vmatpush2.bf16.xpose.msra.mxu0 0
        %721 = vmatprep.subr.bf16.mxu0 0
        %722 = vmatpush2.bf16.xpose.msra.mxu0 0
        %723 = vmatprep.subr.bf16.mxu0 0
        %724 = vmatpush2.bf16.xpose.msra.mxu0 0
        %725 = vmatprep.mubr.bf16.mxu0 0
        %726 = vmatmul.mubr.bf16.gmra.mxu0 %v688
        %v727 = vpop.f32.mrf.mxu0
        %v728 = vadd.f32 0.0, %v727
        %v729 = vpop.f32.mrf.mxu0
        %v730 = vpop.f32.mrf.mxu0
        %v731 = vadd.f32 0.0, %v730
        %v732 = vpop.f32.mrf.mxu0
        %733 = vdwg.mxu0
        %734 = vrot.lane.b32.xlu0 %v440, 120
        %v735 = vpop.permute.xlu0 %734
        %736 = vrot.lane.b32.xlu0 %v440, 88
        %v737 = vpop.permute.xlu0 %736
        %v739 = vsel %vm444, %v735, 0
        %v742 = vsel %vm444, %v737, 0
        %744 = vmatprep.subr.bf16.mxu0 0
        %745 = vmatpush1.bf16.xpose.msra.mxu0 0
        %746 = vmatprep.subr.bf16.mxu0 0
        %747 = vmatpush1.bf16.xpose.msra.mxu0 0
        %748 = vmatprep.subr.bf16.mxu0 0
        %749 = vmatpush1.bf16.xpose.msra.mxu0 0
        %750 = vmatprep.subr.bf16.mxu0 0
        %751 = vmatpush1.bf16.xpose.msra.mxu0 0
        %752 = vmatprep.subr.bf16.mxu0 0
        %753 = vmatpush1.bf16.xpose.msra.mxu0 0
        %754 = vmatprep.subr.bf16.mxu0 0
        %755 = vmatpush1.bf16.xpose.msra.mxu0 0
        %756 = vmatprep.subr.bf16.mxu0 0
        %757 = vmatpush1.bf16.xpose.msra.mxu0 0
        %758 = vmatprep.subr.bf16.mxu0 0
        %759 = vmatpush1.bf16.xpose.msra.mxu0 %v742
        %760 = vmatprep.subr.bf16.mxu0 0
        %761 = vmatpush2.bf16.xpose.msra.mxu0 0
        %762 = vmatprep.subr.bf16.mxu0 0
        %763 = vmatpush2.bf16.xpose.msra.mxu0 0
        %764 = vmatprep.subr.bf16.mxu0 0
        %765 = vmatpush2.bf16.xpose.msra.mxu0 0
        %766 = vmatprep.subr.bf16.mxu0 0
        %767 = vmatpush2.bf16.xpose.msra.mxu0 0
        %768 = vmatprep.subr.bf16.mxu0 0
        %769 = vmatpush2.bf16.xpose.msra.mxu0 0
        %770 = vmatprep.subr.bf16.mxu0 0
        %771 = vmatpush2.bf16.xpose.msra.mxu0 0
        %772 = vmatprep.subr.bf16.mxu0 0
        %773 = vmatpush2.bf16.xpose.msra.mxu0 0
        %774 = vmatprep.subr.bf16.mxu0 0
        %775 = vmatpush2.bf16.xpose.msra.mxu0 0
        %776 = vmatprep.mubr.bf16.mxu0 0
        %777 = vmatmul.mubr.bf16.gmra.mxu0 %v739
        %v778 = vpop.f32.mrf.mxu0
        %v779 = vadd.f32 0.0, %v778
        %v780 = vpop.f32.mrf.mxu0
        %v781 = vpop.f32.mrf.mxu0
        %v782 = vadd.f32 0.0, %v781
        %v783 = vpop.f32.mrf.mxu0
        %784 = vdwg.mxu0
        %v785 = vsel %vm542, %v728, -inf
        %786 = vmax.xlane.f32.xlu0 %v785
        %v787 = vpop.xlane.xlu0 %786
        %v788 = vsel %vm542, %v731, -inf
        %789 = vmax.xlane.f32.xlu0 %v788
        %v790 = vpop.xlane.xlu0 %789
        %v791 = vsel %vm542, %v779, -inf
        %792 = vmax.xlane.f32.xlu0 %v791
        %v793 = vpop.xlane.xlu0 %792
        %v794 = vsel %vm542, %v782, -inf
        %795 = vmax.xlane.f32.xlu0 %v794
        %v796 = vpop.xlane.xlu0 %795
        %v797 = vsub.f32 %v728, %v787
        %v798 = vsub.f32 %v731, %v790
        %v799 = vsub.f32 %v779, %v793
        %v800 = vsub.f32 %v782, %v796
        %v801 = vmul.f32 %v797, 1.442695
        %v802 = vpow.pop %v801
        %v803 = vmul.f32 %v798, 1.442695
        %v804 = vpow.pop %v803
        %v805 = vmul.f32 %v799, 1.442695
        %v806 = vpow.pop %v805
        %v807 = vmul.f32 %v800, 1.442695
        %v808 = vpow.pop %v807
        %v809 = vsel %vm542, %v802, 0.0
        %810 = vadd.xlane.f32.xlu0 %v809
        %v811 = vpop.xlane.xlu0 %810
        %v812 = vsel %vm542, %v804, 0.0
        %813 = vadd.xlane.f32.xlu0 %v812
        %v814 = vpop.xlane.xlu0 %813
        %v815 = vsel %vm542, %v806, 0.0
        %816 = vadd.xlane.f32.xlu0 %v815
        %v817 = vpop.xlane.xlu0 %816
        %v818 = vsel %vm542, %v808, 0.0
        %819 = vadd.xlane.f32.xlu0 %v818
        %v820 = vpop.xlane.xlu0 %819
        %v821 = vrcp.pop %v811
        %v822 = vrcp.pop %v814
        %v823 = vrcp.pop %v817
        %v824 = vrcp.pop %v820
        %v825 = vmul.f32 %v802, %v821
        %v826 = vmul.f32 %v804, %v822
        %v827 = vmul.f32 %v806, %v823
        %v828 = vmul.f32 %v808, %v824
        %v829 = vpack.c.bf16 %v826, %v825
        %v830 = vpack.c.bf16 %v828, %v827
        %831 = vrot.lane.b32.xlu0 %v439, 56
        %v832 = vpop.permute.xlu0 %831
        %v835 = vsel %vm542, %v829, 0
        %837 = vmatprep.subr.bf16.mxu0 0
        %838 = vmatpush1.bf16.msra.mxu0 0
        %839 = vmatprep.subr.bf16.mxu0 0
        %840 = vmatpush1.bf16.msra.mxu0 0
        %841 = vmatprep.subr.bf16.mxu0 0
        %842 = vmatpush1.bf16.msra.mxu0 0
        %843 = vmatprep.subr.bf16.mxu0 0
        %844 = vmatpush1.bf16.msra.mxu0 0
        %845 = vmatprep.subr.bf16.mxu0 0
        %846 = vmatpush1.bf16.msra.mxu0 0
        %847 = vmatprep.subr.bf16.mxu0 0
        %848 = vmatpush1.bf16.msra.mxu0 0
        %849 = vmatprep.subr.bf16.mxu0 0
        %850 = vmatpush1.bf16.msra.mxu0 0
        %851 = vmatprep.subr.bf16.mxu0 0
        %852 = vmatpush1.bf16.msra.mxu0 %v832
        %853 = vmatprep.subr.bf16.mxu0 0
        %854 = vmatpush2.bf16.msra.mxu0 0
        %855 = vmatprep.subr.bf16.mxu0 0
        %856 = vmatpush2.bf16.msra.mxu0 0
        %857 = vmatprep.subr.bf16.mxu0 0
        %858 = vmatpush2.bf16.msra.mxu0 0
        %859 = vmatprep.subr.bf16.mxu0 0
        %860 = vmatpush2.bf16.msra.mxu0 0
        %861 = vmatprep.subr.bf16.mxu0 0
        %862 = vmatpush2.bf16.msra.mxu0 0
        %863 = vmatprep.subr.bf16.mxu0 0
        %864 = vmatpush2.bf16.msra.mxu0 0
        %865 = vmatprep.subr.bf16.mxu0 0
        %866 = vmatpush2.bf16.msra.mxu0 0
        %867 = vmatprep.subr.bf16.mxu0 0
        %868 = vmatpush2.bf16.msra.mxu0 0
        %869 = vmatprep.mubr.bf16.mxu0 0
        %870 = vmatmul.mubr.bf16.gmra.mxu0 %v835
        %v871 = vpop.f32.mrf.mxu0
        %v872 = vadd.f32 0.0, %v871
        %v873 = vpop.f32.mrf.mxu0
        %v874 = vpop.f32.mrf.mxu0
        %v875 = vadd.f32 0.0, %v874
        %v876 = vpop.f32.mrf.mxu0
        %877 = vdwg.mxu0
        %878 = vrot.lane.b32.xlu0 %v440, 56
        %v879 = vpop.permute.xlu0 %878
        %v882 = vsel %vm542, %v830, 0
        %884 = vmatprep.subr.bf16.mxu0 0
        %885 = vmatpush1.bf16.msra.mxu0 0
        %886 = vmatprep.subr.bf16.mxu0 0
        %887 = vmatpush1.bf16.msra.mxu0 0
        %888 = vmatprep.subr.bf16.mxu0 0
        %889 = vmatpush1.bf16.msra.mxu0 0
        %890 = vmatprep.subr.bf16.mxu0 0
        %891 = vmatpush1.bf16.msra.mxu0 0
        %892 = vmatprep.subr.bf16.mxu0 0
        %893 = vmatpush1.bf16.msra.mxu0 0
        %894 = vmatprep.subr.bf16.mxu0 0
        %895 = vmatpush1.bf16.msra.mxu0 0
        %896 = vmatprep.subr.bf16.mxu0 0
        %897 = vmatpush1.bf16.msra.mxu0 0
        %898 = vmatprep.subr.bf16.mxu0 0
        %899 = vmatpush1.bf16.msra.mxu0 %v879
        %900 = vmatprep.subr.bf16.mxu0 0
        %901 = vmatpush2.bf16.msra.mxu0 0
        %902 = vmatprep.subr.bf16.mxu0 0
        %903 = vmatpush2.bf16.msra.mxu0 0
        %904 = vmatprep.subr.bf16.mxu0 0
        %905 = vmatpush2.bf16.msra.mxu0 0
        %906 = vmatprep.subr.bf16.mxu0 0
        %907 = vmatpush2.bf16.msra.mxu0 0
        %908 = vmatprep.subr.bf16.mxu0 0
        %909 = vmatpush2.bf16.msra.mxu0 0
        %910 = vmatprep.subr.bf16.mxu0 0
        %911 = vmatpush2.bf16.msra.mxu0 0
        %912 = vmatprep.subr.bf16.mxu0 0
        %913 = vmatpush2.bf16.msra.mxu0 0
        %914 = vmatprep.subr.bf16.mxu0 0
        %915 = vmatpush2.bf16.msra.mxu0 0
        %916 = vmatprep.mubr.bf16.mxu0 0
        %917 = vmatmul.mubr.bf16.gmra.mxu0 %v882
        %v918 = vpop.f32.mrf.mxu0
        %v919 = vadd.f32 0.0, %v918
        %v920 = vpop.f32.mrf.mxu0
        %v921 = vpop.f32.mrf.mxu0
        %v922 = vadd.f32 0.0, %v921
        %v923 = vpop.f32.mrf.mxu0
        %924 = vdwg.mxu0
        %925 = vrot.lane.b32.xlu0 %v439, 112
        %v926 = vpop.permute.xlu0 %925
        %927 = vrot.lane.b32.xlu0 %v439, 80
        %v928 = vpop.permute.xlu0 %927
        %v930 = vsel %vm444, %v926, 0
        %v933 = vsel %vm444, %v928, 0
        %935 = vmatprep.subr.bf16.mxu0 0
        %936 = vmatpush1.bf16.xpose.msra.mxu0 0
        %937 = vmatprep.subr.bf16.mxu0 0
        %938 = vmatpush1.bf16.xpose.msra.mxu0 0
        %939 = vmatprep.subr.bf16.mxu0 0
        %940 = vmatpush1.bf16.xpose.msra.mxu0 0
        %941 = vmatprep.subr.bf16.mxu0 0
        %942 = vmatpush1.bf16.xpose.msra.mxu0 0
        %943 = vmatprep.subr.bf16.mxu0 0
        %944 = vmatpush1.bf16.xpose.msra.mxu0 0
        %945 = vmatprep.subr.bf16.mxu0 0
        %946 = vmatpush1.bf16.xpose.msra.mxu0 0
        %947 = vmatprep.subr.bf16.mxu0 0
        %948 = vmatpush1.bf16.xpose.msra.mxu0 0
        %949 = vmatprep.subr.bf16.mxu0 0
        %950 = vmatpush1.bf16.xpose.msra.mxu0 %v933
        %951 = vmatprep.subr.bf16.mxu0 0
        %952 = vmatpush2.bf16.xpose.msra.mxu0 0
        %953 = vmatprep.subr.bf16.mxu0 0
        %954 = vmatpush2.bf16.xpose.msra.mxu0 0
        %955 = vmatprep.subr.bf16.mxu0 0
        %956 = vmatpush2.bf16.xpose.msra.mxu0 0
        %957 = vmatprep.subr.bf16.mxu0 0
        %958 = vmatpush2.bf16.xpose.msra.mxu0 0
        %959 = vmatprep.subr.bf16.mxu0 0
        %960 = vmatpush2.bf16.xpose.msra.mxu0 0
        %961 = vmatprep.subr.bf16.mxu0 0
        %962 = vmatpush2.bf16.xpose.msra.mxu0 0
        %963 = vmatprep.subr.bf16.mxu0 0
        %964 = vmatpush2.bf16.xpose.msra.mxu0 0
        %965 = vmatprep.subr.bf16.mxu0 0
        %966 = vmatpush2.bf16.xpose.msra.mxu0 0
        %967 = vmatprep.mubr.bf16.mxu0 0
        %968 = vmatmul.mubr.bf16.gmra.mxu0 %v930
        %v969 = vpop.f32.mrf.mxu0
        %v970 = vadd.f32 0.0, %v969
        %v971 = vpop.f32.mrf.mxu0
        %v972 = vpop.f32.mrf.mxu0
        %v973 = vadd.f32 0.0, %v972
        %v974 = vpop.f32.mrf.mxu0
        %975 = vdwg.mxu0
        %976 = vrot.lane.b32.xlu0 %v440, 112
        %v977 = vpop.permute.xlu0 %976
        %978 = vrot.lane.b32.xlu0 %v440, 80
        %v979 = vpop.permute.xlu0 %978
        %v981 = vsel %vm444, %v977, 0
        %v984 = vsel %vm444, %v979, 0
        %986 = vmatprep.subr.bf16.mxu0 0
        %987 = vmatpush1.bf16.xpose.msra.mxu0 0
        %988 = vmatprep.subr.bf16.mxu0 0
        %989 = vmatpush1.bf16.xpose.msra.mxu0 0
        %990 = vmatprep.subr.bf16.mxu0 0
        %991 = vmatpush1.bf16.xpose.msra.mxu0 0
        %992 = vmatprep.subr.bf16.mxu0 0
        %993 = vmatpush1.bf16.xpose.msra.mxu0 0
        %994 = vmatprep.subr.bf16.mxu0 0
        %995 = vmatpush1.bf16.xpose.msra.mxu0 0
        %996 = vmatprep.subr.bf16.mxu0 0
        %997 = vmatpush1.bf16.xpose.msra.mxu0 0
        %998 = vmatprep.subr.bf16.mxu0 0
        %999 = vmatpush1.bf16.xpose.msra.mxu0 0
        %1000 = vmatprep.subr.bf16.mxu0 0
        %1001 = vmatpush1.bf16.xpose.msra.mxu0 %v984
        %1002 = vmatprep.subr.bf16.mxu0 0
        %1003 = vmatpush2.bf16.xpose.msra.mxu0 0
        %1004 = vmatprep.subr.bf16.mxu0 0
        %1005 = vmatpush2.bf16.xpose.msra.mxu0 0
        %1006 = vmatprep.subr.bf16.mxu0 0
        %1007 = vmatpush2.bf16.xpose.msra.mxu0 0
        %1008 = vmatprep.subr.bf16.mxu0 0
        %1009 = vmatpush2.bf16.xpose.msra.mxu0 0
        %1010 = vmatprep.subr.bf16.mxu0 0
        %1011 = vmatpush2.bf16.xpose.msra.mxu0 0
        %1012 = vmatprep.subr.bf16.mxu0 0
        %1013 = vmatpush2.bf16.xpose.msra.mxu0 0
        %1014 = vmatprep.subr.bf16.mxu0 0
        %1015 = vmatpush2.bf16.xpose.msra.mxu0 0
        %1016 = vmatprep.subr.bf16.mxu0 0
        %1017 = vmatpush2.bf16.xpose.msra.mxu0 0
        %1018 = vmatprep.mubr.bf16.mxu0 0
        %1019 = vmatmul.mubr.bf16.gmra.mxu0 %v981
        %v1020 = vpop.f32.mrf.mxu0
        %v1021 = vadd.f32 0.0, %v1020
        %v1022 = vpop.f32.mrf.mxu0
        %v1023 = vpop.f32.mrf.mxu0
        %v1024 = vadd.f32 0.0, %v1023
        %v1025 = vpop.f32.mrf.mxu0
        %1026 = vdwg.mxu0
        %v1027 = vsel %vm542, %v970, -inf
        %1028 = vmax.xlane.f32.xlu0 %v1027
        %v1029 = vpop.xlane.xlu0 %1028
        %v1030 = vsel %vm542, %v973, -inf
        %1031 = vmax.xlane.f32.xlu0 %v1030
        %v1032 = vpop.xlane.xlu0 %1031
        %v1033 = vsel %vm542, %v1021, -inf
        %1034 = vmax.xlane.f32.xlu0 %v1033
        %v1035 = vpop.xlane.xlu0 %1034
        %v1036 = vsel %vm542, %v1024, -inf
        %1037 = vmax.xlane.f32.xlu0 %v1036
        %v1038 = vpop.xlane.xlu0 %1037
        %v1039 = vsub.f32 %v970, %v1029
        %v1040 = vsub.f32 %v973, %v1032
        %v1041 = vsub.f32 %v1021, %v1035
        %v1042 = vsub.f32 %v1024, %v1038
        %v1043 = vmul.f32 %v1039, 1.442695
        %v1044 = vpow.pop %v1043
        %v1045 = vmul.f32 %v1040, 1.442695
        %v1046 = vpow.pop %v1045
        %v1047 = vmul.f32 %v1041, 1.442695
        %v1048 = vpow.pop %v1047
        %v1049 = vmul.f32 %v1042, 1.442695
        %v1050 = vpow.pop %v1049
        %v1051 = vsel %vm542, %v1044, 0.0
        %1052 = vadd.xlane.f32.xlu0 %v1051
        %v1053 = vpop.xlane.xlu0 %1052
        %v1054 = vsel %vm542, %v1046, 0.0
        %1055 = vadd.xlane.f32.xlu0 %v1054
        %v1056 = vpop.xlane.xlu0 %1055
        %v1057 = vsel %vm542, %v1048, 0.0
        %1058 = vadd.xlane.f32.xlu0 %v1057
        %v1059 = vpop.xlane.xlu0 %1058
        %v1060 = vsel %vm542, %v1050, 0.0
        %1061 = vadd.xlane.f32.xlu0 %v1060
        %v1062 = vpop.xlane.xlu0 %1061
        %v1063 = vrcp.pop %v1053
        %v1064 = vrcp.pop %v1056
        %v1065 = vrcp.pop %v1059
        %v1066 = vrcp.pop %v1062
        %v1067 = vmul.f32 %v1044, %v1063
        %v1068 = vmul.f32 %v1046, %v1064
        %v1069 = vmul.f32 %v1048, %v1065
        %v1070 = vmul.f32 %v1050, %v1066
        %v1071 = vpack.c.bf16 %v1068, %v1067
        %v1072 = vpack.c.bf16 %v1070, %v1069
        %1073 = vrot.lane.b32.xlu0 %v439, 48
        %v1074 = vpop.permute.xlu0 %1073
        %v1077 = vsel %vm542, %v1071, 0
        %1079 = vmatprep.subr.bf16.mxu0 0
        %1080 = vmatpush1.bf16.msra.mxu0 0
        %1081 = vmatprep.subr.bf16.mxu0 0
        %1082 = vmatpush1.bf16.msra.mxu0 0
        %1083 = vmatprep.subr.bf16.mxu0 0
        %1084 = vmatpush1.bf16.msra.mxu0 0
        %1085 = vmatprep.subr.bf16.mxu0 0
        %1086 = vmatpush1.bf16.msra.mxu0 0
        %1087 = vmatprep.subr.bf16.mxu0 0
        %1088 = vmatpush1.bf16.msra.mxu0 0
        %1089 = vmatprep.subr.bf16.mxu0 0
        %1090 = vmatpush1.bf16.msra.mxu0 0
        %1091 = vmatprep.subr.bf16.mxu0 0
        %1092 = vmatpush1.bf16.msra.mxu0 0
        %1093 = vmatprep.subr.bf16.mxu0 0
        %1094 = vmatpush1.bf16.msra.mxu0 %v1074
        %1095 = vmatprep.subr.bf16.mxu0 0
        %1096 = vmatpush2.bf16.msra.mxu0 0
        %1097 = vmatprep.subr.bf16.mxu0 0
        %1098 = vmatpush2.bf16.msra.mxu0 0
        %1099 = vmatprep.subr.bf16.mxu0 0
        %1100 = vmatpush2.bf16.msra.mxu0 0
        %1101 = vmatprep.subr.bf16.mxu0 0
        %1102 = vmatpush2.bf16.msra.mxu0 0
        %1103 = vmatprep.subr.bf16.mxu0 0
        %1104 = vmatpush2.bf16.msra.mxu0 0
        %1105 = vmatprep.subr.bf16.mxu0 0
        %1106 = vmatpush2.bf16.msra.mxu0 0
        %1107 = vmatprep.subr.bf16.mxu0 0
        %1108 = vmatpush2.bf16.msra.mxu0 0
        %1109 = vmatprep.subr.bf16.mxu0 0
        %1110 = vmatpush2.bf16.msra.mxu0 0
        %1111 = vmatprep.mubr.bf16.mxu0 0
        %1112 = vmatmul.mubr.bf16.gmra.mxu0 %v1077
        %v1113 = vpop.f32.mrf.mxu0
        %v1114 = vadd.f32 0.0, %v1113
        %v1115 = vpop.f32.mrf.mxu0
        %v1116 = vpop.f32.mrf.mxu0
        %v1117 = vadd.f32 0.0, %v1116
        %v1118 = vpop.f32.mrf.mxu0
        %1119 = vdwg.mxu0
        %1120 = vrot.lane.b32.xlu0 %v440, 48
        %v1121 = vpop.permute.xlu0 %1120
        %v1124 = vsel %vm542, %v1072, 0
        %1126 = vmatprep.subr.bf16.mxu0 0
        %1127 = vmatpush1.bf16.msra.mxu0 0
        %1128 = vmatprep.subr.bf16.mxu0 0
        %1129 = vmatpush1.bf16.msra.mxu0 0
        %1130 = vmatprep.subr.bf16.mxu0 0
        %1131 = vmatpush1.bf16.msra.mxu0 0
        %1132 = vmatprep.subr.bf16.mxu0 0
        %1133 = vmatpush1.bf16.msra.mxu0 0
        %1134 = vmatprep.subr.bf16.mxu0 0
        %1135 = vmatpush1.bf16.msra.mxu0 0
        %1136 = vmatprep.subr.bf16.mxu0 0
        %1137 = vmatpush1.bf16.msra.mxu0 0
        %1138 = vmatprep.subr.bf16.mxu0 0
        %1139 = vmatpush1.bf16.msra.mxu0 0
        %1140 = vmatprep.subr.bf16.mxu0 0
        %1141 = vmatpush1.bf16.msra.mxu0 %v1121
        %1142 = vmatprep.subr.bf16.mxu0 0
        %1143 = vmatpush2.bf16.msra.mxu0 0
        %1144 = vmatprep.subr.bf16.mxu0 0
        %1145 = vmatpush2.bf16.msra.mxu0 0
        %1146 = vmatprep.subr.bf16.mxu0 0
        %1147 = vmatpush2.bf16.msra.mxu0 0
        %1148 = vmatprep.subr.bf16.mxu0 0
        %1149 = vmatpush2.bf16.msra.mxu0 0
        %1150 = vmatprep.subr.bf16.mxu0 0
        %1151 = vmatpush2.bf16.msra.mxu0 0
        %1152 = vmatprep.subr.bf16.mxu0 0
        %1153 = vmatpush2.bf16.msra.mxu0 0
        %1154 = vmatprep.subr.bf16.mxu0 0
        %1155 = vmatpush2.bf16.msra.mxu0 0
        %1156 = vmatprep.subr.bf16.mxu0 0
        %1157 = vmatpush2.bf16.msra.mxu0 0
        %1158 = vmatprep.mubr.bf16.mxu0 0
        %1159 = vmatmul.mubr.bf16.gmra.mxu0 %v1124
        %v1160 = vpop.f32.mrf.mxu0
        %v1161 = vadd.f32 0.0, %v1160
        %v1162 = vpop.f32.mrf.mxu0
        %v1163 = vpop.f32.mrf.mxu0
        %v1164 = vadd.f32 0.0, %v1163
        %v1165 = vpop.f32.mrf.mxu0
        %1166 = vdwg.mxu0
        %1167 = vrot.lane.b32.xlu0 %v439, 104
        %v1168 = vpop.permute.xlu0 %1167
        %1169 = vrot.lane.b32.xlu0 %v439, 72
        %v1170 = vpop.permute.xlu0 %1169
        %v1172 = vsel %vm444, %v1168, 0
        %v1175 = vsel %vm444, %v1170, 0
        %1177 = vmatprep.subr.bf16.mxu0 0
        %1178 = vmatpush1.bf16.xpose.msra.mxu0 0
        %1179 = vmatprep.subr.bf16.mxu0 0
        %1180 = vmatpush1.bf16.xpose.msra.mxu0 0
        %1181 = vmatprep.subr.bf16.mxu0 0
        %1182 = vmatpush1.bf16.xpose.msra.mxu0 0
        %1183 = vmatprep.subr.bf16.mxu0 0
        %1184 = vmatpush1.bf16.xpose.msra.mxu0 0
        %1185 = vmatprep.subr.bf16.mxu0 0
        %1186 = vmatpush1.bf16.xpose.msra.mxu0 0
        %1187 = vmatprep.subr.bf16.mxu0 0
        %1188 = vmatpush1.bf16.xpose.msra.mxu0 0
        %1189 = vmatprep.subr.bf16.mxu0 0
        %1190 = vmatpush1.bf16.xpose.msra.mxu0 0
        %1191 = vmatprep.subr.bf16.mxu0 0
        %1192 = vmatpush1.bf16.xpose.msra.mxu0 %v1175
        %1193 = vmatprep.subr.bf16.mxu0 0
        %1194 = vmatpush2.bf16.xpose.msra.mxu0 0
        %1195 = vmatprep.subr.bf16.mxu0 0
        %1196 = vmatpush2.bf16.xpose.msra.mxu0 0
        %1197 = vmatprep.subr.bf16.mxu0 0
        %1198 = vmatpush2.bf16.xpose.msra.mxu0 0
        %1199 = vmatprep.subr.bf16.mxu0 0
        %1200 = vmatpush2.bf16.xpose.msra.mxu0 0
        %1201 = vmatprep.subr.bf16.mxu0 0
        %1202 = vmatpush2.bf16.xpose.msra.mxu0 0
        %1203 = vmatprep.subr.bf16.mxu0 0
        %1204 = vmatpush2.bf16.xpose.msra.mxu0 0
        %1205 = vmatprep.subr.bf16.mxu0 0
        %1206 = vmatpush2.bf16.xpose.msra.mxu0 0
        %1207 = vmatprep.subr.bf16.mxu0 0
        %1208 = vmatpush2.bf16.xpose.msra.mxu0 0
        %1209 = vmatprep.mubr.bf16.mxu0 0
        %1210 = vmatmul.mubr.bf16.gmra.mxu0 %v1172
        %v1211 = vpop.f32.mrf.mxu0
        %v1212 = vadd.f32 0.0, %v1211
        %v1213 = vpop.f32.mrf.mxu0
        %v1214 = vpop.f32.mrf.mxu0
        %v1215 = vadd.f32 0.0, %v1214
        %v1216 = vpop.f32.mrf.mxu0
        %1217 = vdwg.mxu0
        %1218 = vrot.lane.b32.xlu0 %v440, 104
        %v1219 = vpop.permute.xlu0 %1218
        %1220 = vrot.lane.b32.xlu0 %v440, 72
        %v1221 = vpop.permute.xlu0 %1220
        %v1223 = vsel %vm444, %v1219, 0
        %v1226 = vsel %vm444, %v1221, 0
        %1228 = vmatprep.subr.bf16.mxu0 0
        %1229 = vmatpush1.bf16.xpose.msra.mxu0 0
        %1230 = vmatprep.subr.bf16.mxu0 0
        %1231 = vmatpush1.bf16.xpose.msra.mxu0 0
        %1232 = vmatprep.subr.bf16.mxu0 0
        %1233 = vmatpush1.bf16.xpose.msra.mxu0 0
        %1234 = vmatprep.subr.bf16.mxu0 0
        %1235 = vmatpush1.bf16.xpose.msra.mxu0 0
        %1236 = vmatprep.subr.bf16.mxu0 0
        %1237 = vmatpush1.bf16.xpose.msra.mxu0 0
        %1238 = vmatprep.subr.bf16.mxu0 0
        %1239 = vmatpush1.bf16.xpose.msra.mxu0 0
        %1240 = vmatprep.subr.bf16.mxu0 0
        %1241 = vmatpush1.bf16.xpose.msra.mxu0 0
        %1242 = vmatprep.subr.bf16.mxu0 0
        %1243 = vmatpush1.bf16.xpose.msra.mxu0 %v1226
        %1244 = vmatprep.subr.bf16.mxu0 0
        %1245 = vmatpush2.bf16.xpose.msra.mxu0 0
        %1246 = vmatprep.subr.bf16.mxu0 0
        %1247 = vmatpush2.bf16.xpose.msra.mxu0 0
        %1248 = vmatprep.subr.bf16.mxu0 0
        %1249 = vmatpush2.bf16.xpose.msra.mxu0 0
        %1250 = vmatprep.subr.bf16.mxu0 0
        %1251 = vmatpush2.bf16.xpose.msra.mxu0 0
        %1252 = vmatprep.subr.bf16.mxu0 0
        %1253 = vmatpush2.bf16.xpose.msra.mxu0 0
        %1254 = vmatprep.subr.bf16.mxu0 0
        %1255 = vmatpush2.bf16.xpose.msra.mxu0 0
        %1256 = vmatprep.subr.bf16.mxu0 0
        %1257 = vmatpush2.bf16.xpose.msra.mxu0 0
        %1258 = vmatprep.subr.bf16.mxu0 0
        %1259 = vmatpush2.bf16.xpose.msra.mxu0 0
        %1260 = vmatprep.mubr.bf16.mxu0 0
        %1261 = vmatmul.mubr.bf16.gmra.mxu0 %v1223
        %v1262 = vpop.f32.mrf.mxu0
        %v1263 = vadd.f32 0.0, %v1262
        %v1264 = vpop.f32.mrf.mxu0
        %v1265 = vpop.f32.mrf.mxu0
        %v1266 = vadd.f32 0.0, %v1265
        %v1267 = vpop.f32.mrf.mxu0
        %1268 = vdwg.mxu0
        %v1269 = vsel %vm542, %v1212, -inf
        %1270 = vmax.xlane.f32.xlu0 %v1269
        %v1271 = vpop.xlane.xlu0 %1270
        %v1272 = vsel %vm542, %v1215, -inf
        %1273 = vmax.xlane.f32.xlu0 %v1272
        %v1274 = vpop.xlane.xlu0 %1273
        %v1275 = vsel %vm542, %v1263, -inf
        %1276 = vmax.xlane.f32.xlu0 %v1275
        %v1277 = vpop.xlane.xlu0 %1276
        %v1278 = vsel %vm542, %v1266, -inf
        %1279 = vmax.xlane.f32.xlu0 %v1278
        %v1280 = vpop.xlane.xlu0 %1279
        %v1281 = vsub.f32 %v1212, %v1271
        %v1282 = vsub.f32 %v1215, %v1274
        %v1283 = vsub.f32 %v1263, %v1277
        %v1284 = vsub.f32 %v1266, %v1280
        %v1285 = vmul.f32 %v1281, 1.442695
        %v1286 = vpow.pop %v1285
        %v1287 = vmul.f32 %v1282, 1.442695
        %v1288 = vpow.pop %v1287
        %v1289 = vmul.f32 %v1283, 1.442695
        %v1290 = vpow.pop %v1289
        %v1291 = vmul.f32 %v1284, 1.442695
        %v1292 = vpow.pop %v1291
        %v1293 = vsel %vm542, %v1286, 0.0
        %1294 = vadd.xlane.f32.xlu0 %v1293
        %v1295 = vpop.xlane.xlu0 %1294
        %v1296 = vsel %vm542, %v1288, 0.0
        %1297 = vadd.xlane.f32.xlu0 %v1296
        %v1298 = vpop.xlane.xlu0 %1297
        %v1299 = vsel %vm542, %v1290, 0.0
        %1300 = vadd.xlane.f32.xlu0 %v1299
        %v1301 = vpop.xlane.xlu0 %1300
        %v1302 = vsel %vm542, %v1292, 0.0
        %1303 = vadd.xlane.f32.xlu0 %v1302
        %v1304 = vpop.xlane.xlu0 %1303
        %v1305 = vrcp.pop %v1295
        %v1306 = vrcp.pop %v1298
        %v1307 = vrcp.pop %v1301
        %v1308 = vrcp.pop %v1304
        %v1309 = vmul.f32 %v1286, %v1305
        %v1310 = vmul.f32 %v1288, %v1306
        %v1311 = vmul.f32 %v1290, %v1307
        %v1312 = vmul.f32 %v1292, %v1308
        %v1313 = vpack.c.bf16 %v1310, %v1309
        %v1314 = vpack.c.bf16 %v1312, %v1311
        %1315 = vrot.lane.b32.xlu0 %v439, 40
        %v1316 = vpop.permute.xlu0 %1315
        %v1319 = vsel %vm542, %v1313, 0
        %1321 = vmatprep.subr.bf16.mxu0 0
        %1322 = vmatpush1.bf16.msra.mxu0 0
        %1323 = vmatprep.subr.bf16.mxu0 0
        %1324 = vmatpush1.bf16.msra.mxu0 0
        %1325 = vmatprep.subr.bf16.mxu0 0
        %1326 = vmatpush1.bf16.msra.mxu0 0
        %1327 = vmatprep.subr.bf16.mxu0 0
        %1328 = vmatpush1.bf16.msra.mxu0 0
        %1329 = vmatprep.subr.bf16.mxu0 0
        %1330 = vmatpush1.bf16.msra.mxu0 0
        %1331 = vmatprep.subr.bf16.mxu0 0
        %1332 = vmatpush1.bf16.msra.mxu0 0
        %1333 = vmatprep.subr.bf16.mxu0 0
        %1334 = vmatpush1.bf16.msra.mxu0 0
        %1335 = vmatprep.subr.bf16.mxu0 0
        %1336 = vmatpush1.bf16.msra.mxu0 %v1316
        %1337 = vmatprep.subr.bf16.mxu0 0
        %1338 = vmatpush2.bf16.msra.mxu0 0
        %1339 = vmatprep.subr.bf16.mxu0 0
        %1340 = vmatpush2.bf16.msra.mxu0 0
        %1341 = vmatprep.subr.bf16.mxu0 0
        %1342 = vmatpush2.bf16.msra.mxu0 0
        %1343 = vmatprep.subr.bf16.mxu0 0
        %1344 = vmatpush2.bf16.msra.mxu0 0
        %1345 = vmatprep.subr.bf16.mxu0 0
        %1346 = vmatpush2.bf16.msra.mxu0 0
        %1347 = vmatprep.subr.bf16.mxu0 0
        %1348 = vmatpush2.bf16.msra.mxu0 0
        %1349 = vmatprep.subr.bf16.mxu0 0
        %1350 = vmatpush2.bf16.msra.mxu0 0
        %1351 = vmatprep.subr.bf16.mxu0 0
        %1352 = vmatpush2.bf16.msra.mxu0 0
        %1353 = vmatprep.mubr.bf16.mxu0 0
        %1354 = vmatmul.mubr.bf16.gmra.mxu0 %v1319
        %v1355 = vpop.f32.mrf.mxu0
        %v1356 = vadd.f32 0.0, %v1355
        %v1357 = vpop.f32.mrf.mxu0
        %v1358 = vpop.f32.mrf.mxu0
        %v1359 = vadd.f32 0.0, %v1358
        %v1360 = vpop.f32.mrf.mxu0
        %1361 = vdwg.mxu0
        %1362 = vrot.lane.b32.xlu0 %v440, 40
        %v1363 = vpop.permute.xlu0 %1362
        %v1366 = vsel %vm542, %v1314, 0
        %1368 = vmatprep.subr.bf16.mxu0 0
        %1369 = vmatpush1.bf16.msra.mxu0 0
        %1370 = vmatprep.subr.bf16.mxu0 0
        %1371 = vmatpush1.bf16.msra.mxu0 0
        %1372 = vmatprep.subr.bf16.mxu0 0
        %1373 = vmatpush1.bf16.msra.mxu0 0
        %1374 = vmatprep.subr.bf16.mxu0 0
        %1375 = vmatpush1.bf16.msra.mxu0 0
        %1376 = vmatprep.subr.bf16.mxu0 0
        %1377 = vmatpush1.bf16.msra.mxu0 0
        %1378 = vmatprep.subr.bf16.mxu0 0
        %1379 = vmatpush1.bf16.msra.mxu0 0
        %1380 = vmatprep.subr.bf16.mxu0 0
        %1381 = vmatpush1.bf16.msra.mxu0 0
        %1382 = vmatprep.subr.bf16.mxu0 0
        %1383 = vmatpush1.bf16.msra.mxu0 %v1363
        %1384 = vmatprep.subr.bf16.mxu0 0
        %1385 = vmatpush2.bf16.msra.mxu0 0
        %1386 = vmatprep.subr.bf16.mxu0 0
        %1387 = vmatpush2.bf16.msra.mxu0 0
        %1388 = vmatprep.subr.bf16.mxu0 0
        %1389 = vmatpush2.bf16.msra.mxu0 0
        %1390 = vmatprep.subr.bf16.mxu0 0
        %1391 = vmatpush2.bf16.msra.mxu0 0
        %1392 = vmatprep.subr.bf16.mxu0 0
        %1393 = vmatpush2.bf16.msra.mxu0 0
        %1394 = vmatprep.subr.bf16.mxu0 0
        %1395 = vmatpush2.bf16.msra.mxu0 0
        %1396 = vmatprep.subr.bf16.mxu0 0
        %1397 = vmatpush2.bf16.msra.mxu0 0
        %1398 = vmatprep.subr.bf16.mxu0 0
        %1399 = vmatpush2.bf16.msra.mxu0 0
        %1400 = vmatprep.mubr.bf16.mxu0 0
        %1401 = vmatmul.mubr.bf16.gmra.mxu0 %v1366
        %v1402 = vpop.f32.mrf.mxu0
        %v1403 = vadd.f32 0.0, %v1402
        %v1404 = vpop.f32.mrf.mxu0
        %v1405 = vpop.f32.mrf.mxu0
        %v1406 = vadd.f32 0.0, %v1405
        %v1407 = vpop.f32.mrf.mxu0
        %1408 = vdwg.mxu0
        %1413 = vrot.lane.b32.xlu0 %v872, 8
        %v1414 = vpop.permute.xlu0 %1413
        %1415 = vrot.lane.b32.xlu0 %v875, 8
        %v1416 = vpop.permute.xlu0 %1415
        %1417 = vrot.lane.b32.xlu0 %v919, 8
        %v1418 = vpop.permute.xlu0 %1417
        %1419 = vrot.lane.b32.xlu0 %v922, 8
        %v1420 = vpop.permute.xlu0 %1419
        %1429 = vrot.lane.b32.xlu0 %v1114, 16
        %v1430 = vpop.permute.xlu0 %1429
        %1431 = vrot.lane.b32.xlu0 %v1117, 16
        %v1432 = vpop.permute.xlu0 %1431
        %1433 = vrot.lane.b32.xlu0 %v1161, 16
        %v1434 = vpop.permute.xlu0 %1433
        %1435 = vrot.lane.b32.xlu0 %v1164, 16
        %v1436 = vpop.permute.xlu0 %1435
        %1445 = vrot.lane.b32.xlu0 %v1356, 24
        %v1446 = vpop.permute.xlu0 %1445
        %1447 = vrot.lane.b32.xlu0 %v1359, 24
        %v1448 = vpop.permute.xlu0 %1447
        %1449 = vrot.lane.b32.xlu0 %v1403, 24
        %v1450 = vpop.permute.xlu0 %1449
        %1451 = vrot.lane.b32.xlu0 %v1406, 24
        %v1452 = vpop.permute.xlu0 %1451
        %v1457 = vsel %vm444, %v630, %v1414
        %v1458 = vsel %vm444, %v633, %v1416
        %v1459 = vsel %vm444, %v677, %v1418
        %v1460 = vsel %vm444, %v680, %v1420
        %v1461 = vsel %vm542, %v1457, %v1430
        %v1462 = vsel %vm542, %v1458, %v1432
        %v1463 = vsel %vm542, %v1459, %v1434
        %v1464 = vsel %vm542, %v1460, %v1436
        %vm1465 = vcmask 195584
        %v1466 = vsel %vm1465, %v1461, %v1446
        %v1467 = vsel %vm1465, %v1462, %v1448
        %v1468 = vsel %vm1465, %v1463, %v1450
        %v1469 = vsel %vm1465, %v1464, %v1452
        %v1470 = vpack.c.bf16 %v1467, %v1466
        %v1471 = vpack.c.bf16 %v1469, %v1468
        %v1472 = vlaneseq
        %v1473 = vshrl.u32 %v1472, 7
        %v1474 = vsub.s32 2, %v1473
        %v1475 = vrot.slane %v324, %v1474
        %1476 = vrot.lane.b32.xlu0 %v379, 32
        %v1477 = vpop.permute.xlu0 %1476
        %1478 = vrot.lane.b32.xlu0 %v380, 32
        %v1479 = vpop.permute.xlu0 %1478
        %v1483 = vsel %vm383, %v1470, 0
        %v1486 = vsel %vm383, %v1471, 0
        %1488 = vmatprep.subr.bf16.mxu0 0
        %1489 = vmatpush1.bf16.msra.mxu0 0
        %1490 = vmatprep.subr.bf16.mxu0 0
        %1491 = vmatpush1.bf16.msra.mxu0 0
        %1492 = vmatprep.subr.bf16.mxu0 0
        %1493 = vmatpush1.bf16.msra.mxu0 0
        %1494 = vmatprep.subr.bf16.mxu0 0
        %1495 = vmatpush1.bf16.msra.mxu0 0
        %1496 = vmatprep.subr.bf16.mxu0 0
        %1497 = vmatpush1.bf16.msra.mxu0 0
        %1498 = vmatprep.subr.bf16.mxu0 0
        %1499 = vmatpush1.bf16.msra.mxu0 0
        %1500 = vmatprep.subr.bf16.mxu0 0
        %1501 = vmatpush1.bf16.msra.mxu0 %v1479
        %1502 = vmatprep.subr.bf16.mxu0 0
        %1503 = vmatpush1.bf16.msra.mxu0 %v1477
        %1504 = vmatprep.subr.bf16.mxu0 0
        %1505 = vmatpush2.bf16.msra.mxu0 0
        %1506 = vmatprep.subr.bf16.mxu0 0
        %1507 = vmatpush2.bf16.msra.mxu0 0
        %1508 = vmatprep.subr.bf16.mxu0 0
        %1509 = vmatpush2.bf16.msra.mxu0 0
        %1510 = vmatprep.subr.bf16.mxu0 0
        %1511 = vmatpush2.bf16.msra.mxu0 0
        %1512 = vmatprep.subr.bf16.mxu0 0
        %1513 = vmatpush2.bf16.msra.mxu0 0
        %1514 = vmatprep.subr.bf16.mxu0 0
        %1515 = vmatpush2.bf16.msra.mxu0 0
        %1516 = vmatprep.subr.bf16.mxu0 0
        %1517 = vmatpush2.bf16.msra.mxu0 0
        %1518 = vmatprep.subr.bf16.mxu0 0
        %1519 = vmatpush2.bf16.msra.mxu0 0
        %1520 = vmatprep.mubr.bf16.mxu0 0
        %1521 = vmatmul.mubr.bf16.gmra.mxu0 %v1483
        %v1522 = vpop.f32.mrf.mxu0
        %v1523 = vadd.f32 %v1475, %v1522
        %v1524 = vpop.f32.mrf.mxu0
        %v1525 = vpop.f32.mrf.mxu0
        %v1526 = vadd.f32 %v1475, %v1525
        %v1527 = vpop.f32.mrf.mxu0
        %1528 = vmatprep.mubr.bf16.mxu0 0
        %1529 = vmatmul.mubr.bf16.gmra.mxu0 %v1486
        %v1530 = vpop.f32.mrf.mxu0
        %v1531 = vadd.f32 %v1475, %v1530
        %v1532 = vpop.f32.mrf.mxu0
        %v1533 = vpop.f32.mrf.mxu0
        %v1534 = vadd.f32 %v1475, %v1533
        %v1535 = vpop.f32.mrf.mxu0
        %1536 = vdwg.mxu0
        %v1537 = vpack.c.bf16 %v1526, %v1523
        %v1538 = vpack.c.bf16 %v1534, %v1531
        %v1539 = vlaneseq
        %v1540 = vshrl.u32 %v1539, 7
        %v1541 = vsub.s32 3, %v1540
        %v1542 = vrot.slane %v324, %v1541
        %v1543 = vunpack.c.h.b16 %v320
        %v1544 = vunpack.c.h.b16 %v321
        %v1545 = vunpack.c.h.b16 %v322
        %v1546 = vunpack.c.h.b16 %v323
        %v1547 = vpack.c.b16 %v1544, %v1543
        %v1548 = vpack.c.b16 %v1546, %v1545
        %v1552 = vsel %vm383, %v1537, 0
        %v1555 = vsel %vm383, %v1538, 0
        %1557 = vmatprep.subr.bf16.mxu0 0
        %1558 = vmatpush1.bf16.msra.mxu0 0
        %1559 = vmatprep.subr.bf16.mxu0 0
        %1560 = vmatpush1.bf16.msra.mxu0 0
        %1561 = vmatprep.subr.bf16.mxu0 0
        %1562 = vmatpush1.bf16.msra.mxu0 0
        %1563 = vmatprep.subr.bf16.mxu0 0
        %1564 = vmatpush1.bf16.msra.mxu0 0
        %1565 = vmatprep.subr.bf16.mxu0 0
        %1566 = vmatpush1.bf16.msra.mxu0 0
        %1567 = vmatprep.subr.bf16.mxu0 0
        %1568 = vmatpush1.bf16.msra.mxu0 0
        %1569 = vmatprep.subr.bf16.mxu0 0
        %1570 = vmatpush1.bf16.msra.mxu0 %v1548
        %1571 = vmatprep.subr.bf16.mxu0 0
        %1572 = vmatpush1.bf16.msra.mxu0 %v1547
        %1573 = vmatprep.subr.bf16.mxu0 0
        %1574 = vmatpush2.bf16.msra.mxu0 0
        %1575 = vmatprep.subr.bf16.mxu0 0
        %1576 = vmatpush2.bf16.msra.mxu0 0
        %1577 = vmatprep.subr.bf16.mxu0 0
        %1578 = vmatpush2.bf16.msra.mxu0 0
        %1579 = vmatprep.subr.bf16.mxu0 0
        %1580 = vmatpush2.bf16.msra.mxu0 0
        %1581 = vmatprep.subr.bf16.mxu0 0
        %1582 = vmatpush2.bf16.msra.mxu0 0
        %1583 = vmatprep.subr.bf16.mxu0 0
        %1584 = vmatpush2.bf16.msra.mxu0 0
        %1585 = vmatprep.subr.bf16.mxu0 0
        %1586 = vmatpush2.bf16.msra.mxu0 0
        %1587 = vmatprep.subr.bf16.mxu0 0
        %1588 = vmatpush2.bf16.msra.mxu0 0
        %1589 = vmatprep.mubr.bf16.mxu0 0
        %1590 = vmatmul.mubr.bf16.gmra.mxu0 %v1552
        %v1591 = vpop.f32.mrf.mxu0
        %v1592 = vadd.f32 %v1542, %v1591
        %v1593 = vpop.f32.mrf.mxu0
        %v1594 = vpop.f32.mrf.mxu0
        %v1595 = vadd.f32 %v1542, %v1594
        %v1596 = vpop.f32.mrf.mxu0
        %1597 = vmatprep.mubr.bf16.mxu0 0
        %1598 = vmatmul.mubr.bf16.gmra.mxu0 %v1555
        %v1599 = vpop.f32.mrf.mxu0
        %v1600 = vadd.f32 %v1542, %v1599
        %v1601 = vpop.f32.mrf.mxu0
        %v1602 = vpop.f32.mrf.mxu0
        %v1603 = vadd.f32 %v1542, %v1602
        %v1604 = vpop.f32.mrf.mxu0
        %1605 = vdwg.mxu0
        %v1606 = vmax.f32 %v1592, 0.0
        %v1607 = vmax.f32 %v1595, 0.0
        %v1608 = vmax.f32 %v1600, 0.0
        %v1609 = vmax.f32 %v1603, 0.0
        %v1610 = vlaneseq
        %v1611 = vshrl.u32 %v1610, 7
        %v1612 = vsub.s32 4, %v1611
        %v1613 = vrot.slane %v324, %v1612
        %v1614 = vmul.f32 %v1606, %v1613
        %v1615 = vmul.f32 %v1607, %v1613
        %v1616 = vmul.f32 %v1608, %v1613
        %v1617 = vmul.f32 %v1609, %v1613
        %v1618 = vsel %vm383, %v1614, 0.0
        %1619 = vadd.xlane.f32.xlu0 %v1618
        %v1620 = vpop.xlane.xlu0 %1619
        %v1621 = vsel %vm383, %v1615, 0.0
        %1622 = vadd.xlane.f32.xlu0 %v1621
        %v1623 = vpop.xlane.xlu0 %1622
        %v1624 = vsel %vm383, %v1616, 0.0
        %1625 = vadd.xlane.f32.xlu0 %v1624
        %v1626 = vpop.xlane.xlu0 %1625
        %v1627 = vsel %vm383, %v1617, 0.0
        %1628 = vadd.xlane.f32.xlu0 %v1627
        %v1629 = vpop.xlane.xlu0 %1628
        %v1630 = vld [vmem:[%s313] sm:$0x3]
        %v1632 = vlaneseq
        %v1633 = vshrl.u32 %v1632, 7
        %v1634 = vsub.s32 0, %v1633
        %v1635 = vrot.slane %v1630, %v1634
        %1637 = vbcast.lane.b32.xlu0 %v1635, 256
        %v1638 = vpop.permute.xlu0 %1637
        %s1640 = sor.u32 256, 8
        %1641 = vbcast.lane.b32.xlu0 %v1635, %s1640
        %v1642 = vpop.permute.xlu0 %1641
        %v1643 = vlaneseq
        %v1644 = vshrl.u32 %v1643, 7
        %v1645 = vsub.s32 1, %v1644
        %v1646 = vrot.slane %v1630, %v1645
        %1648 = vbcast.lane.b32.xlu0 %v1646, 256
        %v1649 = vpop.permute.xlu0 %1648
        %s1651 = sor.u32 256, 8
        %1652 = vbcast.lane.b32.xlu0 %v1646, %s1651
        %v1653 = vpop.permute.xlu0 %1652
        %v1658 = vadd.f32 %v1620, %v1638
        %v1659 = vadd.f32 %v1623, %v1642
        %v1660 = vadd.f32 %v1626, %v1649
        %v1661 = vadd.f32 %v1629, %v1653
        %1666 = vset.pattern.permute.xlu0 0
        %1667 = vperm.xlu0 %1666, %v1658
        %v1668 = vpop.permute.xlu0 %1667
        %1669 = vset.pattern.permute.xlu0 0
        %1670 = vperm.xlu0 %1669, %v1659
        %v1671 = vpop.permute.xlu0 %1670
        %1672 = vset.pattern.permute.xlu0 0
        %1673 = vperm.xlu0 %1672, %v1660
        %v1674 = vpop.permute.xlu0 %1673
        %1675 = vset.pattern.permute.xlu0 0
        %1676 = vperm.xlu0 %1675, %v1661
        %v1677 = vpop.permute.xlu0 %1676
        %v1678 = vlaneseq
        %v1679 = vand.u32 %v1678, 127
        %v1680 = vlaneseq
        %v1681 = vshrl.u32 %v1680, 7
        %v1682 = vsub.s32 %v1679, %v1681
        %v1683 = vrot.slane %v1668, %v1682
        %v1684 = vadd.s32 %v1679, 4294967288
        %v1685 = vlaneseq
        %v1686 = vshrl.u32 %v1685, 7
        %v1687 = vsub.s32 %v1684, %v1686
        %v1688 = vrot.slane %v1671, %v1687
        %vm1689 = vcmask 130112
        %v1690 = vsel %vm1689, %v1688, %v1683
        %v1691 = vlaneseq
        %v1692 = vshrl.u32 %v1691, 7
        %v1693 = vsub.s32 %v1679, %v1692
        %v1694 = vrot.slane %v1674, %v1693
        %v1695 = vlaneseq
        %v1696 = vshrl.u32 %v1695, 7
        %v1697 = vsub.s32 %v1684, %v1696
        %v1698 = vrot.slane %v1677, %v1697
        %v1699 = vsel %vm1689, %v1698, %v1694
        %vm1700 = vcmask 1041409
        %v1701 = vsel %vm1700, %v1699, %v1690
        %vm1703 = vcmask 123904
        %1704 = vst.msk [vmem:[%s289] sm:$0x3] %vm1703, %v1701
        %v1705 = vpack.c.bf16 %v1659, %v1658
        %v1706 = vpack.c.bf16 %v1661, %v1660
        %v1707 = vlaneseq
        %v1708 = vshrl.u32 %v1707, 7
        %v1709 = vsub.s32 5, %v1708
        %v1710 = vrot.slane %v324, %v1709
        %v1713 = vunpack.c.l.b16 %v1705
        %v1714 = vunpack.c.h.b16 %v1705
        %v1715 = vunpack.c.l.b16 %v1706
        %v1716 = vunpack.c.h.b16 %v1706
        %1717 = vset.pattern.permute.xlu0 0
        %1718 = vperm.xlu0 %1717, %v1713
        %v1719 = vpop.permute.xlu0 %1718
        %1720 = vset.pattern.permute.xlu0 0
        %1721 = vperm.xlu0 %1720, %v1714
        %v1722 = vpop.permute.xlu0 %1721
        %1723 = vset.pattern.permute.xlu0 0
        %1724 = vperm.xlu0 %1723, %v1715
        %v1725 = vpop.permute.xlu0 %1724
        %1726 = vset.pattern.permute.xlu0 0
        %1727 = vperm.xlu0 %1726, %v1716
        %v1728 = vpop.permute.xlu0 %1727
        %v1729 = vlaneseq
        %v1730 = vshrl.u32 %v1729, 7
        %v1731 = vsub.s32 %v1679, %v1730
        %v1732 = vrot.slane %v1719, %v1731
        %v1733 = vlaneseq
        %v1734 = vshrl.u32 %v1733, 7
        %v1735 = vsub.s32 %v1684, %v1734
        %v1736 = vrot.slane %v1722, %v1735
        %v1737 = vsel %vm1689, %v1736, %v1732
        %v1738 = vlaneseq
        %v1739 = vshrl.u32 %v1738, 7
        %v1740 = vsub.s32 %v1679, %v1739
        %v1741 = vrot.slane %v1725, %v1740
        %v1742 = vlaneseq
        %v1743 = vshrl.u32 %v1742, 7
        %v1744 = vsub.s32 %v1684, %v1743
        %v1745 = vrot.slane %v1728, %v1744
        %v1746 = vsel %vm1689, %v1745, %v1741
        %v1747 = vsel %vm1700, %v1746, %v1737
        %v1748 = vpack.c.b16 %v1747, %v1747
        %1749 = vrot.lane.b32.xlu0 %v1547, 96
        %v1750 = vpop.permute.xlu0 %1749
        %v1753 = vsel %vm542, %v1748, 0
        %1755 = vmatprep.subr.bf16.mxu0 0
        %1756 = vmatpush1.bf16.msra.mxu0 0
        %1757 = vmatprep.subr.bf16.mxu0 0
        %1758 = vmatpush1.bf16.msra.mxu0 0
        %1759 = vmatprep.subr.bf16.mxu0 0
        %1760 = vmatpush1.bf16.msra.mxu0 0
        %1761 = vmatprep.subr.bf16.mxu0 0
        %1762 = vmatpush1.bf16.msra.mxu0 0
        %1763 = vmatprep.subr.bf16.mxu0 0
        %1764 = vmatpush1.bf16.msra.mxu0 0
        %1765 = vmatprep.subr.bf16.mxu0 0
        %1766 = vmatpush1.bf16.msra.mxu0 0
        %1767 = vmatprep.subr.bf16.mxu0 0
        %1768 = vmatpush1.bf16.msra.mxu0 0
        %1769 = vmatprep.subr.bf16.mxu0 0
        %1770 = vmatpush1.bf16.msra.mxu0 %v1750
        %1771 = vmatprep.subr.bf16.mxu0 0
        %1772 = vmatpush2.bf16.msra.mxu0 0
        %1773 = vmatprep.subr.bf16.mxu0 0
        %1774 = vmatpush2.bf16.msra.mxu0 0
        %1775 = vmatprep.subr.bf16.mxu0 0
        %1776 = vmatpush2.bf16.msra.mxu0 0
        %1777 = vmatprep.subr.bf16.mxu0 0
        %1778 = vmatpush2.bf16.msra.mxu0 0
        %1779 = vmatprep.subr.bf16.mxu0 0
        %1780 = vmatpush2.bf16.msra.mxu0 0
        %1781 = vmatprep.subr.bf16.mxu0 0
        %1782 = vmatpush2.bf16.msra.mxu0 0
        %1783 = vmatprep.subr.bf16.mxu0 0
        %1784 = vmatpush2.bf16.msra.mxu0 0
        %1785 = vmatprep.subr.bf16.mxu0 0
        %1786 = vmatpush2.bf16.msra.mxu0 0
        %1787 = vmatprep.mubr.bf16.mxu0 0
        %1788 = vmatmul.mubr.bf16.gmra.mxu0 %v1753
        %v1789 = vpop.f32.mrf.mxu0
        %v1790 = vadd.f32 %v1710, %v1789
        %v1791 = vpop.f32.mrf.mxu0
        %v1792 = vpop.f32.mrf.mxu0
        %v1793 = vpop.f32.mrf.mxu0
        %1794 = vdwg.mxu0
        %v1795 = vmax.f32 %v1790, 0.0
        %vm1796 = vcmask 254976
        %1797 = vst.msk [vmem:[%s296] sm:$0x3] %vm1796, %v1795
        %v1798 = vld [vmem:[%s2] sm:$0xff]
        %v1799 = vld [vmem:[%s2 + $0x8] sm:$0x3]
        %1801 = vset.pattern.permute.xlu0 0
        %1802 = vperm.xlu0 %1801, %v1798
        %v1803 = vpop.permute.xlu0 %1802
        %1806 = vset.pattern.permute.xlu0 0
        %1807 = vperm.xlu0 %1806, %v1799
        %v1808 = vpop.permute.xlu0 %1807
        %v1810 = vlaneseq
        %v1811 = vshrl.u32 %v1810, 7
        %v1812 = vsub.s32 6, %v1811
        %v1813 = vrot.slane %v324, %v1812
        %v1814 = vmul.f32 %v1803, %v1813
        %v1815 = vmul.f32 %v1808, %v1813
        %v1816 = vlaneseq
        %v1817 = vshrl.u32 %v1816, 7
        %v1818 = vsub.s32 7, %v1817
        %v1819 = vrot.slane %v324, %v1818
        %v1820 = vadd.f32 %v1814, %v1819
        %v1821 = vadd.f32 %v1815, %v1819
        %v1822 = vmax.f32 %v1820, 0.0
        %v1823 = vmax.f32 %v1821, 0.0
        %1824 = vst.msk [vmem:[%s318] sm:$0xff] %vm542, %v1822
        %1825 = vst.msk [vmem:[%s318 + $0x8] sm:$0x3] %vm1703, %v1823
        %s1826 = sand.u32 %s148, 1
        %s1827 = scalar_lea.sflag [#allocation3], %s1826
        %s1828 = sand.u32 %s148, 1
        %s1829 = smul.addr %s1828, 2
        %s1830 = scalar_lea.vmem [#allocation2], %s1829
        %s1831 = sand.u32 %s174, 1
        %s1832 = scalar_lea.sflag [#allocation5], %s1831
        %s1833 = sand.u32 %s174, 1
        %s1834 = smul.addr %s1833, 2
        %s1835 = scalar_lea.vmem [#allocation4], %s1834
        %p1836 = scmp.lt.s32.totalorder %s25, 1
        %s1837 = scalar_select %p1836, %s25, 1
        %s1838 = smul.addr %s1837, 2
        %s1839 = smul.addr %s1838, 8
        %s1840 = scalar_lea.vmem %s7, %s1839
        // Predicated region
        $region41: #{attention_gn_step.1} parent=39 // pred_check
          %p1841 = pneg %p158
        $region42: #{attention_gn_step.1} parent=39 // pred_check_branch
          %1843 = sbr.rel (%p1841) target = $region44
        $region43: #{attention_gn_step.1} parent=39 // pred_region
          %s1845 = ssub.s32 32, 32
          %1846 = vsyncadd %s1827, %s1845
          %s1847 = smul.addr %s25, 32
          %s1848 = scalar_lea.hbm %s5, %s1847
          %s1850 = sshll.u32 %s1830, 4
          %s1851 = int_to_ptr.vmem [resolvable:$true] %s1850
          %1853 = dma.vmem_to_hbm [thread:$0]  %s1851, 32, %s1848, %s1827
        $region44: #{attention_gn_step.1} parent=39 // pred_fallthru
          _
        // Predicated region
        $region45: #{attention_gn_step.1} parent=39 // pred_check
          %p1854 = pneg %p184
        $region46: #{attention_gn_step.1} parent=39 // pred_check_branch
          %1856 = sbr.rel (%p1854) target = $region48
        $region47: #{attention_gn_step.1} parent=39 // pred_region
          %s1858 = ssub.s32 32, 32
          %1859 = vsyncadd %s1832, %s1858
          %s1860 = smul.addr %s25, 32
          %s1861 = scalar_lea.hbm %s6, %s1860
          %s1863 = sshll.u32 %s1835, 4
          %s1864 = int_to_ptr.vmem [resolvable:$true] %s1863
          %1866 = dma.vmem_to_hbm [thread:$0]  %s1864, 32, %s1861, %s1832
        $region48: #{attention_gn_step.1} parent=39 // pred_fallthru
          _
        // Predicated region
        $region49: #{attention_gn_step.1} parent=39 // pred_check
          %p1867 = pneg %p210
        $region50: #{attention_gn_step.1} parent=39 // pred_check_branch
          %1869 = sbr.rel (%p1867) target = $region52
        $region51: #{attention_gn_step.1} parent=39 // pred_region
          _
        $region52: #{attention_gn_step.1} parent=39 // pred_fallthru
          _
      $region40: #{attention_gn_step.1} parent=5 // pred_fallthru
        _
      %p1870 = scmp.le.s32.totalorder 2, %s20
      // Predicated region
      $region53: #{attention_gn_step.1} parent=5 // pred_check
        %p1871 = pneg %p1870
      $region54: #{attention_gn_step.1} parent=5 // pred_check_branch
        %1873 = sbr.rel (%p1871) target = $region56
      $region55: #{attention_gn_step.1} parent=5 // pred_region
        %s1874 = ssub.s32 %s20, 2
        // Predicated region
        $region57: #{attention_gn_step.1} parent=55 // pred_check
          %p1875 = pneg %p164
        $region58: #{attention_gn_step.1} parent=55 // pred_check_branch
          %1877 = sbr.rel (%p1875) target = $region60
        $region59: #{attention_gn_step.1} parent=55 // pred_region
          %s1878 = sand.u32 %s149, 1
          %s1879 = scalar_lea.sflag [#allocation3], %s1878
          %s1880 = sand.u32 %s149, 1
          %s1881 = smul.addr %s1880, 2
          %s1882 = scalar_lea.vmem [#allocation2], %s1881
          %1883 = dma.done %s1879, 32
        $region60: #{attention_gn_step.1} parent=55 // pred_fallthru
          _
        // Predicated region
        $region61: #{attention_gn_step.1} parent=55 // pred_check
          %p1884 = pneg %p190
        $region62: #{attention_gn_step.1} parent=55 // pred_check_branch
          %1886 = sbr.rel (%p1884) target = $region64
        $region63: #{attention_gn_step.1} parent=55 // pred_region
          %s1887 = sand.u32 %s175, 1
          %s1888 = scalar_lea.sflag [#allocation5], %s1887
          %s1889 = sand.u32 %s175, 1
          %s1890 = smul.addr %s1889, 2
          %s1891 = scalar_lea.vmem [#allocation4], %s1890
          %1892 = dma.done %s1888, 32
        $region64: #{attention_gn_step.1} parent=55 // pred_fallthru
          _
        // Predicated region
        $region65: #{attention_gn_step.1} parent=55 // pred_check
          %p1893 = pneg %p216
        $region66: #{attention_gn_step.1} parent=55 // pred_check_branch
          %1895 = sbr.rel (%p1893) target = $region68
        $region67: #{attention_gn_step.1} parent=55 // pred_region
          %p1896 = scmp.lt.s32.totalorder %s26, 1
          %s1897 = scalar_select %p1896, %s26, 1
          %s1898 = smul.addr %s1897, 2
          %s1899 = smul.addr %s1898, 8
          %s1900 = scalar_lea.vmem %s7, %s1899
        $region68: #{attention_gn_step.1} parent=55 // pred_fallthru
          _
      $region56: #{attention_gn_step.1} parent=5 // pred_fallthru
        _
    $region6: #{attention_gn_step.1} parent=1 // loop_footer
      %s24 = sadd.s32 1, %s20
    $region7: #{attention_gn_step.1} parent=1 // loop_footer_branch
      %19 = sbr.rel target = $region3
    $region8: #{attention_gn_step.1} parent=1 // loop_exit
      _
    %1901 = vsyncpa [#allocation3], 1
    %s1902 = scalar_lea.sflag [#allocation3], 1
    %1903 = vsyncpa %s1902, 1
    %1904 = vsyncpa [#allocation5], 1
    %s1905 = scalar_lea.sflag [#allocation5], 1
    %1906 = vsyncpa %s1905, 1

</llo_original>
